<compile_context>
chip_gen: v7x
topology: tpu7x:2x2x1
jax: 0.10.0
libtpu: 0.0.40
codegen_flags: <defaults>
</compile_context>

<pallas_src>
import jax
import jax.numpy as jnp
from jax.experimental import pallas as pl
from jax.experimental.pallas import tpu as pltpu

EPS = 1e-5
LANE = 128
VMEM_LIMIT_BYTES = 48 * 1024 * 1024   # under v7x 64 MiB physical; fine on v5e/v6e


def _round_up(n, m=LANE):
    return ((n + m - 1) // m) * m


# ----------------------------------------------------------------------------
# Parameter construction (PyTorch-default-style init), packing, reference.
# ----------------------------------------------------------------------------
def init_params(key, in_features, first_features, layers, n_classes):
    """PyTorch-style init. Linear weights stored pre-transposed as (in, out)."""

    def linear(k, fan_in, fan_out):
        k1, k2 = jax.random.split(k)
        bound = 1.0 / (fan_in ** 0.5)
        w = jax.random.uniform(k1, (fan_in, fan_out), jnp.float32, -bound, bound)
        b = jax.random.uniform(k2, (fan_out,), jnp.float32, -bound, bound)
        return w, b

    def bn(fan):
        return jnp.ones((fan,), jnp.float32), jnp.zeros((fan,), jnp.float32)

    n_blocks = len(layers) - 1
    keys = iter(jax.random.split(key, 4 + 3 * max(n_blocks, 1)))

    params = {
        "linear1": linear(next(keys), in_features, first_features),
        "norm1": bn(first_features),
        "linear_res": linear(next(keys), first_features, layers[0]),
        "blocks": [],
    }
    for i in range(n_blocks):
        blk = {
            "lin1": linear(next(keys), layers[i], layers[i]),
            "n1": bn(layers[i]),
            "lin2": linear(next(keys), layers[i], layers[i + 1]),
            "n2": bn(layers[i + 1]),
            "down": None,
        }
        if layers[i] != layers[i + 1]:
            blk["down"] = (linear(next(keys), layers[i], layers[i + 1]),
                           bn(layers[i + 1]))
        params["blocks"].append(blk)
    params["last"] = linear(next(keys), layers[-1], n_classes)
    return params


def pack_params(params, is_no_res=False):
    """Pack forward-pass parameters into two lane-dense arrays.

    W : (n_mats, F, OUT_W) bf16 -- every linear weight; a block's lin1 and
        downsample weights are fused side-by-side into one (F, 2F) slab.
    V : (n_vecs, F) f32        -- biases / BN gammas / BN betas.
    Packing order matches kernel consumption order exactly.  Biases of linears
    that feed directly into a train-mode BN are NOT packed (they cancel).
    """
    all_dims = []
    for name in ("linear1", "linear_res", "last"):
        all_dims.extend(params[name][0].shape)
    for blk in params["blocks"]:
        all_dims.extend(blk["lin1"][0].shape)
        all_dims.extend(blk["lin2"][0].shape)
        if blk["down"] is not None:
            all_dims.extend(blk["down"][0][0].shape)
    F = _round_up(max(all_dims))
    # TODO(synk): for heterogeneous layer widths, pack per-layer lane-rounded
    # shapes instead of a uniform-F cube to avoid inflated FLOPs / weight bytes.

    fused = [(blk["down"] is not None) and (not is_no_res)
             for blk in params["blocks"]]
    out_w = 2 * F if any(fused) else F

    def pad_single(w):
        k, n = w.shape
        return (jnp.zeros((F, out_w), jnp.float32)
                .at[:k, :n].set(w).astype(jnp.bfloat16))

    def pad_fused(w_a, w_b):
        ka, na = w_a.shape
        kb, nb = w_b.shape
        m = jnp.zeros((F, out_w), jnp.float32)
        m = m.at[:ka, :na].set(w_a)
        m = m.at[:kb, F:F + nb].set(w_b)
        return m.astype(jnp.bfloat16)

    def pad_vec(v):
        return jnp.pad(v, (0, F - v.shape[0])).astype(jnp.float32)

    mats, vecs, widths = [], [], []

    mats.append(pad_single(params["linear1"][0])); widths.append(F)        # bias folded
    vecs += [pad_vec(params["norm1"][0]), pad_vec(params["norm1"][1])]
    mats.append(pad_single(params["linear_res"][0])); widths.append(F)
    vecs.append(pad_vec(params["linear_res"][1]))

    for blk, fz in zip(params["blocks"], fused):
        if fz:
            (wd, _bd), (gd, bed) = blk["down"]
            mats.append(pad_fused(blk["lin1"][0], wd)); widths.append(2 * F)
            vecs += [pad_vec(blk["n1"][0]), pad_vec(blk["n1"][1]),
                     pad_vec(gd), pad_vec(bed)]
        else:
            mats.append(pad_single(blk["lin1"][0])); widths.append(F)
            vecs += [pad_vec(blk["n1"][0]), pad_vec(blk["n1"][1])]
        mats.append(pad_single(blk["lin2"][0])); widths.append(F)
        vecs += [pad_vec(blk["n2"][0]), pad_vec(blk["n2"][1])]

    mats.append(pad_single(params["last"][0])); widths.append(F)
    vecs.append(pad_vec(params["last"][1]))

    W = jnp.stack(mats)   # (n_mats, F, OUT_W) bf16
    V = jnp.stack(vecs)   # (n_vecs, F)        f32
    meta = dict(F=F, out_w=out_w, fused=fused, widths=widths)
    return W, V, meta


def reference_forward(x, params, is_no_res=False, kernel_numerics=False):
    """Pure-JAX reference.  kernel_numerics=True mirrors the kernel's math
    (bf16 matmuls, pre-BN biases dropped, var = E[h^2]-mean^2); False gives the
    exact f32 PyTorch train-mode semantics."""
    mm_dtype = jnp.bfloat16 if kernel_numerics else jnp.float32
    keep_pre_bn_bias = not kernel_numerics

    def lin(h, wb, keep_bias=True):
        w, b = wb
        out = jnp.dot(h.astype(mm_dtype), w.astype(mm_dtype),
                      preferred_element_type=jnp.float32)
        return out + b if keep_bias else out

    def bn(h, gb):
        g, be = gb
        mean = jnp.mean(h, axis=0)
        if kernel_numerics:
            var = jnp.maximum(jnp.mean(h * h, axis=0) - mean * mean, 0.0)
        else:
            var = jnp.mean((h - mean) ** 2, axis=0)
        return (h - mean) * jax.lax.rsqrt(var + EPS) * g + be

    h = jnp.maximum(
        bn(lin(x, params["linear1"], keep_bias=keep_pre_bn_bias), params["norm1"]), 0.0)
    h = lin(h, params["linear_res"])
    for blk in params["blocks"]:
        h1 = jnp.maximum(
            bn(lin(h, blk["lin1"], keep_bias=keep_pre_bn_bias), blk["n1"]), 0.0)
        h1 = bn(lin(h1, blk["lin2"], keep_bias=keep_pre_bn_bias), blk["n2"])
        if is_no_res:
            h = h1
        else:
            if blk["down"] is not None:
                h = bn(lin(h, blk["down"][0], keep_bias=keep_pre_bn_bias),
                       blk["down"][1])
            h = h1 + h
        h = jnp.maximum(h, 0.0)
    return lin(h, params["last"])


# ----------------------------------------------------------------------------
# Pallas kernel
# ----------------------------------------------------------------------------
def make_resnet_kernel(meta, is_no_res, batch):
    """Fused forward pass. Everything resident in VMEM, statically unrolled."""
    F = meta["F"]
    fused = meta["fused"]
    inv_n = 1.0 / batch

    def kernel(x_ref, w_ref, v_ref, out_ref):
        wi = [0]
        vi = [0]

        def next_w(ncols):
            i = wi[0]; wi[0] += 1
            return w_ref[i, :, 0:ncols]            # (F, ncols) bf16, lane-dense

        def next_v():
            i = vi[0]; vi[0] += 1
            return v_ref[i:i + 1, :]               # (1, F) f32, lane-dense row

        def matmul(h, ncols=F):
            # bf16 MXU operands, f32 accumulation.
            return jnp.dot(h.astype(jnp.bfloat16), next_w(ncols),
                           preferred_element_type=jnp.float32)

        def bn(h, gamma, beta):
            # Train-mode BatchNorm1d.  sum(h) and sum(h*h) are independent
            # sublane reductions (de-serialized); var = E[h^2] - mean^2.
            # (Preceding linear bias intentionally dropped: cancels exactly.)
            s1 = jnp.sum(h, axis=0, keepdims=True)
            s2 = jnp.sum(h * h, axis=0, keepdims=True)
            mean = s1 * inv_n
            var = jnp.maximum(s2 * inv_n - mean * mean, 0.0)
            scale = gamma * jax.lax.rsqrt(var + EPS)
            return h * scale + (beta - mean * scale)

        x = x_ref[...]                             # (B, F) bf16, lane-padded

        # linear1 -> norm1 -> relu
        h = matmul(x)
        h = jnp.maximum(bn(h, next_v(), next_v()), 0.0)

        # linear_res (bias kept: no BN follows directly)
        h = matmul(h) + next_v()

        # residual blocks (statically unrolled)
        # TODO(synk): on v6e/v7x the inter-layer activation could be carried in
        # bf16 (bf16 VPU) to halve live vreg/VMEM bytes at large batch.
        for i in range(len(fused)):
            if fused[i]:
                # Fused lin1 || downsample matmul on the shared pre-block h.
                both = matmul(h, ncols=2 * F)      # (B, 2F)
                h1p = both[:, :F]
                hdp = both[:, F:]
                g1, b1, gd, bd = next_v(), next_v(), next_v(), next_v()
                h1 = jnp.maximum(bn(h1p, g1, b1), 0.0)
                hres = bn(hdp, gd, bd)
            else:
                h1 = jnp.maximum(bn(matmul(h), next_v(), next_v()), 0.0)
                hres = h

            h1 = bn(matmul(h1), next_v(), next_v())
            h = h1 if is_no_res else (h1 + hres)   # _forward_plus
            h = jnp.maximum(h, 0.0)

        # last_linear
        out_ref[...] = (matmul(h) + next_v()).astype(out_ref.dtype)

    return kernel


def test_resnet_forward(x, W, V, meta, n_classes, is_no_res=False):
    B = x.shape[0]
    F = meta["F"]

    # Lane-pad + bf16-cast the input outside the kernel (tiny XLA op).
    x_pad = jnp.zeros((B, F), jnp.bfloat16).at[:, : x.shape[1]].set(
        x.astype(jnp.bfloat16))

    kernel = make_resnet_kernel(meta, is_no_res, B)

    # VMEM footprint: DMA'd operands + output + live f32 intermediates (+25% headroom).
    bytes_in = x_pad.size * 2 + W.size * 2 + V.size * 4
    bytes_out = B * F * 4
    live_acts = 6 * B * (2 * F) * 4          # a handful of (B, 2F) f32 live values
    footprint = bytes_in + bytes_out + live_acts
    assert footprint < 0.75 * VMEM_LIMIT_BYTES, "model too large for resident-VMEM kernel"
    # TODO(synk): for configs whose packed W approaches the VMEM budget (esp. v7x
    # 64 MiB), stream W per layer via memory_space=pl.ANY + make_async_copy
    # double-buffering instead of full residency.

    n_bn = 1 + sum(3 if f else 2 for f in meta["fused"])
    cost = pl.CostEstimate(
        flops=sum(2 * B * F * w for w in meta["widths"]),
        transcendentals=n_bn * F,
        bytes_accessed=bytes_in + bytes_out,
    )

    vmem = pl.BlockSpec(memory_space=pltpu.MemorySpace.VMEM)
    out_pad = pl.pallas_call(
        kernel,
        out_shape=jax.ShapeDtypeStruct((B, F), jnp.float32),
        in_specs=[vmem, vmem, vmem],
        out_specs=vmem,
        compiler_params=pltpu.CompilerParams(vmem_limit_bytes=VMEM_LIMIT_BYTES),
        cost_estimate=cost,
    )(x_pad, W, V)
    # TODO(synk): on v7x (2 TCs) a leading batch grid axis with
    # dimension_semantics=("parallel",) would engage the second core, but per-block
    # BN statistics would break full-batch PyTorch train-mode semantics without a
    # cross-block two-pass/accumulator reduction.

    return out_pad[:, :n_classes]


# ----------------------------------------------------------------------------
# Demo / self-check
# ----------------------------------------------------------------------------
if __name__ == "__main__":
    # Config consistent with TestResNet(in_features, layers, ...).
    in_features = 16
    first_features = 32
    layers = [32, 64]        # one residual block with a downsample branch
    n_classes = 2
    B = 128                  # >=16 fills bf16 vreg sublanes; 128 fills MXU rows

    key = jax.random.PRNGKey(0)
    k_x, k_p = jax.random.split(key)
    x = jax.random.normal(k_x, (B, in_features), jnp.float32)

    params = init_params(k_p, in_features, first_features, layers, n_classes)
    W, V, meta = pack_params(params, is_no_res=False)

    out = test_resnet_forward(x, W, V, meta, n_classes, is_no_res=False)
    out = jax.block_until_ready(out)
    assert out.shape == (B, n_classes)

    # Tight check vs a reference that mirrors the kernel's numerics.
    ref_mirror = reference_forward(x, params, is_no_res=False, kernel_numerics=True)
    assert jnp.allclose(out, ref_mirror, atol=2e-2, rtol=2e-2), "mismatch vs kernel-mirror ref"

    # Loose sanity check vs the exact-f32 PyTorch-semantics reference.
    ref_f32 = reference_forward(x, params, is_no_res=False, kernel_numerics=False)
    assert jnp.allclose(out, ref_f32, atol=2e-1, rtol=2e-1), "mismatch vs f32 ref"

    print("KERNEL_OK")
</pallas_src>

<mosaic_0001>
module attributes {stable_mosaic.version = 11 : i64} {
  func.func @kernel(%arg0: memref<128x128xbf16, #tpu.memory_space<vmem>>, %arg1: memref<5x128x256xbf16, #tpu.memory_space<vmem>>, %arg2: memref<10x128xf32, #tpu.memory_space<vmem>>, %arg3: memref<128x128xf32, #tpu.memory_space<vmem>>) attributes {dimension_semantics = [], scalar_prefetch = 0 : i64, scratch_operands = 0 : i64, tpu.core_type = #tpu.core_type<tc>} {
    %c0 = arith.constant 0 : index
    %c0_0 = arith.constant 0 : index
    %0 = vector.load %arg0[%c0, %c0_0] : memref<128x128xbf16, #tpu.memory_space<vmem>>, vector<128x128xbf16>
    %c0_1 = arith.constant 0 : index
    %c0_2 = arith.constant 0 : index
    %c0_3 = arith.constant 0 : index
    %1 = vector.load %arg1[%c0_1, %c0_2, %c0_3] : memref<5x128x256xbf16, #tpu.memory_space<vmem>>, vector<1x128x128xbf16>
    %2 = vector.shape_cast %1 : vector<1x128x128xbf16> to vector<128x128xbf16>
    %cst = arith.constant dense<0.000000e+00> : vector<128x128xf32>
    %3 = tpu.matmul %0, %2, %cst {dimension_numbers = #tpu.dot_dimension_numbers<[1], [0], [0], [1], [0, 0, 1, 1], [], []>} : vector<128x128xbf16>, vector<128x128xbf16>, vector<128x128xf32> -> vector<128x128xf32>
    %c0_4 = arith.constant 0 : index
    %c0_5 = arith.constant 0 : index
    %4 = vector.load %arg2[%c0_4, %c0_5] : memref<10x128xf32, #tpu.memory_space<vmem>>, vector<1x128xf32>
    %c1 = arith.constant 1 : index
    %c0_6 = arith.constant 0 : index
    %5 = vector.load %arg2[%c1, %c0_6] : memref<10x128xf32, #tpu.memory_space<vmem>>, vector<1x128xf32>
    %cst_7 = arith.constant dense<0.000000e+00> : vector<128xf32>
    %6 = vector.multi_reduction <add>, %3, %cst_7 [0] : vector<128x128xf32> to vector<128xf32>
    %7 = vector.shape_cast %6 : vector<128xf32> to vector<1x128xf32>
    %8 = arith.mulf %3, %3 : vector<128x128xf32>
    %cst_8 = arith.constant dense<0.000000e+00> : vector<128xf32>
    %9 = vector.multi_reduction <add>, %8, %cst_8 [0] : vector<128x128xf32> to vector<128xf32>
    %10 = vector.shape_cast %9 : vector<128xf32> to vector<1x128xf32>
    %cst_9 = arith.constant 7.812500e-03 : f32
    %11 = vector.broadcast %cst_9 : f32 to vector<1x128xf32>
    %12 = arith.mulf %7, %11 : vector<1x128xf32>
    %cst_10 = arith.constant 7.812500e-03 : f32
    %13 = vector.broadcast %cst_10 : f32 to vector<1x128xf32>
    %14 = arith.mulf %10, %13 : vector<1x128xf32>
    %15 = arith.mulf %12, %12 : vector<1x128xf32>
    %16 = arith.subf %14, %15 : vector<1x128xf32>
    %cst_11 = arith.constant 0.000000e+00 : f32
    %17 = vector.broadcast %cst_11 : f32 to vector<1x128xf32>
    %18 = arith.maximumf %16, %17 : vector<1x128xf32>
    %cst_12 = arith.constant 9.99999974E-6 : f32
    %19 = vector.broadcast %cst_12 : f32 to vector<1x128xf32>
    %20 = arith.addf %18, %19 : vector<1x128xf32>
    %21 = math.rsqrt %20 : vector<1x128xf32>
    %22 = arith.mulf %4, %21 : vector<1x128xf32>
    %23 = vector.broadcast %22 : vector<1x128xf32> to vector<128x128xf32>
    %24 = arith.mulf %3, %23 : vector<128x128xf32>
    %25 = arith.mulf %12, %22 : vector<1x128xf32>
    %26 = arith.subf %5, %25 : vector<1x128xf32>
    %27 = vector.broadcast %26 : vector<1x128xf32> to vector<128x128xf32>
    %28 = arith.addf %24, %27 : vector<128x128xf32>
    %cst_13 = arith.constant 0.000000e+00 : f32
    %29 = vector.broadcast %cst_13 : f32 to vector<128x128xf32>
    %30 = arith.maximumf %28, %29 : vector<128x128xf32>
    %31 = arith.truncf %30 : vector<128x128xf32> to vector<128x128xbf16>
    %c1_14 = arith.constant 1 : index
    %c0_15 = arith.constant 0 : index
    %c0_16 = arith.constant 0 : index
    %32 = vector.load %arg1[%c1_14, %c0_15, %c0_16] : memref<5x128x256xbf16, #tpu.memory_space<vmem>>, vector<1x128x128xbf16>
    %33 = vector.shape_cast %32 : vector<1x128x128xbf16> to vector<128x128xbf16>
    %cst_17 = arith.constant dense<0.000000e+00> : vector<128x128xf32>
    %34 = tpu.matmul %31, %33, %cst_17 {dimension_numbers = #tpu.dot_dimension_numbers<[1], [0], [0], [1], [0, 0, 1, 1], [], []>} : vector<128x128xbf16>, vector<128x128xbf16>, vector<128x128xf32> -> vector<128x128xf32>
    %c2 = arith.constant 2 : index
    %c0_18 = arith.constant 0 : index
    %35 = vector.load %arg2[%c2, %c0_18] : memref<10x128xf32, #tpu.memory_space<vmem>>, vector<1x128xf32>
    %36 = vector.broadcast %35 : vector<1x128xf32> to vector<128x128xf32>
    %37 = arith.addf %34, %36 : vector<128x128xf32>
    %38 = arith.truncf %37 : vector<128x128xf32> to vector<128x128xbf16>
    %c2_19 = arith.constant 2 : index
    %c0_20 = arith.constant 0 : index
    %c0_21 = arith.constant 0 : index
    %39 = vector.load %arg1[%c2_19, %c0_20, %c0_21] : memref<5x128x256xbf16, #tpu.memory_space<vmem>>, vector<1x128x256xbf16>
    %40 = vector.shape_cast %39 : vector<1x128x256xbf16> to vector<128x256xbf16>
    %cst_22 = arith.constant dense<0.000000e+00> : vector<128x256xf32>
    %41 = tpu.matmul %38, %40, %cst_22 {dimension_numbers = #tpu.dot_dimension_numbers<[1], [0], [0], [1], [0, 0, 1, 1], [], []>} : vector<128x128xbf16>, vector<128x256xbf16>, vector<128x256xf32> -> vector<128x256xf32>
    %42 = vector.extract_strided_slice %41 {offsets = [0, 0], sizes = [128, 128], strides = [1, 1]} : vector<128x256xf32> to vector<128x128xf32>
    %43 = vector.extract_strided_slice %41 {offsets = [0, 128], sizes = [128, 128], strides = [1, 1]} : vector<128x256xf32> to vector<128x128xf32>
    %c3 = arith.constant 3 : index
    %c0_23 = arith.constant 0 : index
    %44 = vector.load %arg2[%c3, %c0_23] : memref<10x128xf32, #tpu.memory_space<vmem>>, vector<1x128xf32>
    %c4 = arith.constant 4 : index
    %c0_24 = arith.constant 0 : index
    %45 = vector.load %arg2[%c4, %c0_24] : memref<10x128xf32, #tpu.memory_space<vmem>>, vector<1x128xf32>
    %c5 = arith.constant 5 : index
    %c0_25 = arith.constant 0 : index
    %46 = vector.load %arg2[%c5, %c0_25] : memref<10x128xf32, #tpu.memory_space<vmem>>, vector<1x128xf32>
    %c6 = arith.constant 6 : index
    %c0_26 = arith.constant 0 : index
    %47 = vector.load %arg2[%c6, %c0_26] : memref<10x128xf32, #tpu.memory_space<vmem>>, vector<1x128xf32>
    %cst_27 = arith.constant dense<0.000000e+00> : vector<128xf32>
    %48 = vector.multi_reduction <add>, %42, %cst_27 [0] : vector<128x128xf32> to vector<128xf32>
    %49 = vector.shape_cast %48 : vector<128xf32> to vector<1x128xf32>
    %50 = arith.mulf %42, %42 : vector<128x128xf32>
    %cst_28 = arith.constant dense<0.000000e+00> : vector<128xf32>
    %51 = vector.multi_reduction <add>, %50, %cst_28 [0] : vector<128x128xf32> to vector<128xf32>
    %52 = vector.shape_cast %51 : vector<128xf32> to vector<1x128xf32>
    %cst_29 = arith.constant 7.812500e-03 : f32
    %53 = vector.broadcast %cst_29 : f32 to vector<1x128xf32>
    %54 = arith.mulf %49, %53 : vector<1x128xf32>
    %cst_30 = arith.constant 7.812500e-03 : f32
    %55 = vector.broadcast %cst_30 : f32 to vector<1x128xf32>
    %56 = arith.mulf %52, %55 : vector<1x128xf32>
    %57 = arith.mulf %54, %54 : vector<1x128xf32>
    %58 = arith.subf %56, %57 : vector<1x128xf32>
    %cst_31 = arith.constant 0.000000e+00 : f32
    %59 = vector.broadcast %cst_31 : f32 to vector<1x128xf32>
    %60 = arith.maximumf %58, %59 : vector<1x128xf32>
    %cst_32 = arith.constant 9.99999974E-6 : f32
    %61 = vector.broadcast %cst_32 : f32 to vector<1x128xf32>
    %62 = arith.addf %60, %61 : vector<1x128xf32>
    %63 = math.rsqrt %62 : vector<1x128xf32>
    %64 = arith.mulf %44, %63 : vector<1x128xf32>
    %65 = vector.broadcast %64 : vector<1x128xf32> to vector<128x128xf32>
    %66 = arith.mulf %42, %65 : vector<128x128xf32>
    %67 = arith.mulf %54, %64 : vector<1x128xf32>
    %68 = arith.subf %45, %67 : vector<1x128xf32>
    %69 = vector.broadcast %68 : vector<1x128xf32> to vector<128x128xf32>
    %70 = arith.addf %66, %69 : vector<128x128xf32>
    %cst_33 = arith.constant 0.000000e+00 : f32
    %71 = vector.broadcast %cst_33 : f32 to vector<128x128xf32>
    %72 = arith.maximumf %70, %71 : vector<128x128xf32>
    %cst_34 = arith.constant dense<0.000000e+00> : vector<128xf32>
    %73 = vector.multi_reduction <add>, %43, %cst_34 [0] : vector<128x128xf32> to vector<128xf32>
    %74 = vector.shape_cast %73 : vector<128xf32> to vector<1x128xf32>
    %75 = arith.mulf %43, %43 : vector<128x128xf32>
    %cst_35 = arith.constant dense<0.000000e+00> : vector<128xf32>
    %76 = vector.multi_reduction <add>, %75, %cst_35 [0] : vector<128x128xf32> to vector<128xf32>
    %77 = vector.shape_cast %76 : vector<128xf32> to vector<1x128xf32>
    %cst_36 = arith.constant 7.812500e-03 : f32
    %78 = vector.broadcast %cst_36 : f32 to vector<1x128xf32>
    %79 = arith.mulf %74, %78 : vector<1x128xf32>
    %cst_37 = arith.constant 7.812500e-03 : f32
    %80 = vector.broadcast %cst_37 : f32 to vector<1x128xf32>
    %81 = arith.mulf %77, %80 : vector<1x128xf32>
    %82 = arith.mulf %79, %79 : vector<1x128xf32>
    %83 = arith.subf %81, %82 : vector<1x128xf32>
    %cst_38 = arith.constant 0.000000e+00 : f32
    %84 = vector.broadcast %cst_38 : f32 to vector<1x128xf32>
    %85 = arith.maximumf %83, %84 : vector<1x128xf32>
    %cst_39 = arith.constant 9.99999974E-6 : f32
    %86 = vector.broadcast %cst_39 : f32 to vector<1x128xf32>
    %87 = arith.addf %85, %86 : vector<1x128xf32>
    %88 = math.rsqrt %87 : vector<1x128xf32>
    %89 = arith.mulf %46, %88 : vector<1x128xf32>
    %90 = vector.broadcast %89 : vector<1x128xf32> to vector<128x128xf32>
    %91 = arith.mulf %43, %90 : vector<128x128xf32>
    %92 = arith.mulf %79, %89 : vector<1x128xf32>
    %93 = arith.subf %47, %92 : vector<1x128xf32>
    %94 = vector.broadcast %93 : vector<1x128xf32> to vector<128x128xf32>
    %95 = arith.addf %91, %94 : vector<128x128xf32>
    %96 = arith.truncf %72 : vector<128x128xf32> to vector<128x128xbf16>
    %c3_40 = arith.constant 3 : index
    %c0_41 = arith.constant 0 : index
    %c0_42 = arith.constant 0 : index
    %97 = vector.load %arg1[%c3_40, %c0_41, %c0_42] : memref<5x128x256xbf16, #tpu.memory_space<vmem>>, vector<1x128x128xbf16>
    %98 = vector.shape_cast %97 : vector<1x128x128xbf16> to vector<128x128xbf16>
    %cst_43 = arith.constant dense<0.000000e+00> : vector<128x128xf32>
    %99 = tpu.matmul %96, %98, %cst_43 {dimension_numbers = #tpu.dot_dimension_numbers<[1], [0], [0], [1], [0, 0, 1, 1], [], []>} : vector<128x128xbf16>, vector<128x128xbf16>, vector<128x128xf32> -> vector<128x128xf32>
    %c7 = arith.constant 7 : index
    %c0_44 = arith.constant 0 : index
    %100 = vector.load %arg2[%c7, %c0_44] : memref<10x128xf32, #tpu.memory_space<vmem>>, vector<1x128xf32>
    %c8 = arith.constant 8 : index
    %c0_45 = arith.constant 0 : index
    %101 = vector.load %arg2[%c8, %c0_45] : memref<10x128xf32, #tpu.memory_space<vmem>>, vector<1x128xf32>
    %cst_46 = arith.constant dense<0.000000e+00> : vector<128xf32>
    %102 = vector.multi_reduction <add>, %99, %cst_46 [0] : vector<128x128xf32> to vector<128xf32>
    %103 = vector.shape_cast %102 : vector<128xf32> to vector<1x128xf32>
    %104 = arith.mulf %99, %99 : vector<128x128xf32>
    %cst_47 = arith.constant dense<0.000000e+00> : vector<128xf32>
    %105 = vector.multi_reduction <add>, %104, %cst_47 [0] : vector<128x128xf32> to vector<128xf32>
    %106 = vector.shape_cast %105 : vector<128xf32> to vector<1x128xf32>
    %cst_48 = arith.constant 7.812500e-03 : f32
    %107 = vector.broadcast %cst_48 : f32 to vector<1x128xf32>
    %108 = arith.mulf %103, %107 : vector<1x128xf32>
    %cst_49 = arith.constant 7.812500e-03 : f32
    %109 = vector.broadcast %cst_49 : f32 to vector<1x128xf32>
    %110 = arith.mulf %106, %109 : vector<1x128xf32>
    %111 = arith.mulf %108, %108 : vector<1x128xf32>
    %112 = arith.subf %110, %111 : vector<1x128xf32>
    %cst_50 = arith.constant 0.000000e+00 : f32
    %113 = vector.broadcast %cst_50 : f32 to vector<1x128xf32>
    %114 = arith.maximumf %112, %113 : vector<1x128xf32>
    %cst_51 = arith.constant 9.99999974E-6 : f32
    %115 = vector.broadcast %cst_51 : f32 to vector<1x128xf32>
    %116 = arith.addf %114, %115 : vector<1x128xf32>
    %117 = math.rsqrt %116 : vector<1x128xf32>
    %118 = arith.mulf %100, %117 : vector<1x128xf32>
    %119 = vector.broadcast %118 : vector<1x128xf32> to vector<128x128xf32>
    %120 = arith.mulf %99, %119 : vector<128x128xf32>
    %121 = arith.mulf %108, %118 : vector<1x128xf32>
    %122 = arith.subf %101, %121 : vector<1x128xf32>
    %123 = vector.broadcast %122 : vector<1x128xf32> to vector<128x128xf32>
    %124 = arith.addf %120, %123 : vector<128x128xf32>
    %125 = arith.addf %124, %95 : vector<128x128xf32>
    %cst_52 = arith.constant 0.000000e+00 : f32
    %126 = vector.broadcast %cst_52 : f32 to vector<128x128xf32>
    %127 = arith.maximumf %125, %126 : vector<128x128xf32>
    %128 = arith.truncf %127 : vector<128x128xf32> to vector<128x128xbf16>
    %c4_53 = arith.constant 4 : index
    %c0_54 = arith.constant 0 : index
    %c0_55 = arith.constant 0 : index
    %129 = vector.load %arg1[%c4_53, %c0_54, %c0_55] : memref<5x128x256xbf16, #tpu.memory_space<vmem>>, vector<1x128x128xbf16>
    %130 = vector.shape_cast %129 : vector<1x128x128xbf16> to vector<128x128xbf16>
    %cst_56 = arith.constant dense<0.000000e+00> : vector<128x128xf32>
    %131 = tpu.matmul %128, %130, %cst_56 {dimension_numbers = #tpu.dot_dimension_numbers<[1], [0], [0], [1], [0, 0, 1, 1], [], []>} : vector<128x128xbf16>, vector<128x128xbf16>, vector<128x128xf32> -> vector<128x128xf32>
    %c9 = arith.constant 9 : index
    %c0_57 = arith.constant 0 : index
    %132 = vector.load %arg2[%c9, %c0_57] : memref<10x128xf32, #tpu.memory_space<vmem>>, vector<1x128xf32>
    %133 = vector.broadcast %132 : vector<1x128xf32> to vector<128x128xf32>
    %134 = arith.addf %131, %133 : vector<128x128xf32>
    %c0_58 = arith.constant 0 : index
    %c0_59 = arith.constant 0 : index
    %135 = vector.load %arg3[%c0_58, %c0_59] : memref<128x128xf32, #tpu.memory_space<vmem>>, vector<128x128xf32>
    tpu.vector_store %arg3[%c0_58, %c0_59], %134 {strides = array<i32>} : memref<128x128xf32, #tpu.memory_space<vmem>>, vector<128x128xf32>,
    return
  }
}

</mosaic_0001>

<llo_original>
// kernel: tpu_custom_call.1
$region0: #{tpu_custom_call.1}
  #allocation0 [shape = 'u32[]', space=smem, size = 0x4, offset = 0x4, fixed_abs, tag = 'smem constant byte address 0x4 - core index']
  #allocation1 [shape = 'u32[144,128]{1,0:T(1,128)}', space=vmem, size = 0x12000, scoped, tag = 'internal scratch']
  %s0 = inlined_call_operand.hbm [shape: bf16[128,128], index: 0, kind: input, shape index: {}]
  %s1 = inlined_call_operand.hbm [shape: bf16[5,128,256], index: 1, kind: input, shape index: {}]
  %s2 = inlined_call_operand.hbm [shape: f32[10,128], index: 2, kind: input, shape index: {}]
  %s3 = inlined_call_operand.hbm [shape: f32[128,128], index: 3, kind: output, shape index: {}]
  %s4 = sld [smem:[#allocation0]]
  $region34: #{tpu_custom_call.1} parent=0
    _
  %s6 = ssub.s32 1, %s4
  %s7 = scalar_select 0, %s6, %s4
  $region1: #{tpu_custom_call.1} parent=0
    #allocation2 [shape = 'u8[32768]{0}', space=vmem, size = 0x8000, scoped, tag = 'input window, operand 0, single buffered']
    #allocation3 [shape = 's32[1]{0}', space=sflag, size = 0x4, scoped, tag = 'scoped memory for tpu_custom_call.1']
    #allocation4 [shape = 's32[1]{0}', space=sflag, size = 0x4, scoped, tag = 'scoped memory for tpu_custom_call.1']
    #allocation5 [shape = 'u8[327680]{0}', space=vmem, size = 0x50000, scoped, tag = 'input window, operand 1, single buffered']
    #allocation6 [shape = 's32[1]{0}', space=sflag, size = 0x4, scoped, tag = 'scoped memory for tpu_custom_call.1']
    #allocation7 [shape = 'u8[8192]{0}', space=vmem, size = 0x2000, scoped, tag = 'input window, operand 2, single buffered']
    #allocation8 [shape = 'u8[65536]{0}', space=vmem, size = 0x10000, scoped, tag = 'output window, operand 0, single buffered']
    %8 = vsyncpa [#allocation3], 0
    %9 = vsyncpa [#allocation6], 0
    %10 = vsyncpa [#allocation4], 0
    // Predicated region
    $region2: #{tpu_custom_call.1} parent=1 // pred_check
      _
    $region3: #{tpu_custom_call.1} parent=1 // pred_check_branch
      %12 = sbr.rel (0) target = $region5
    $region4: #{tpu_custom_call.1} parent=1 // pred_region
      %s14 = ssub.s32 1024, 1024
      %15 = vsyncadd [#allocation3], %s14
      %s16 = sshll.u32 [#allocation2], 4
      %s17 = int_to_ptr.vmem [resolvable:$true] %s16
      %22 = dma.hbm_to_vmem [thread:$0]  %s0, 1024, %s17, [#allocation3], 64, 64, 4
    $region5: #{tpu_custom_call.1} parent=1 // pred_fallthru
      _
    // Predicated region
    $region6: #{tpu_custom_call.1} parent=1 // pred_check
      _
    $region7: #{tpu_custom_call.1} parent=1 // pred_check_branch
      %24 = sbr.rel (0) target = $region9
    $region8: #{tpu_custom_call.1} parent=1 // pred_region
      %s26 = ssub.s32 10240, 10240
      %27 = vsyncadd [#allocation6], %s26
      %s28 = sshll.u32 [#allocation5], 4
      %s29 = int_to_ptr.vmem [resolvable:$true] %s28
      %34 = dma.hbm_to_vmem [thread:$0]  %s1, 10240, %s29, [#allocation6], 128, 128, 8
    $region9: #{tpu_custom_call.1} parent=1 // pred_fallthru
      _
    // Predicated region
    $region10: #{tpu_custom_call.1} parent=1 // pred_check
      _
    $region11: #{tpu_custom_call.1} parent=1 // pred_check_branch
      %36 = sbr.rel (0) target = $region13
    $region12: #{tpu_custom_call.1} parent=1 // pred_region
      %s38 = ssub.s32 256, 256
      %39 = vsyncadd [#allocation6], %s38
      %s40 = sshll.u32 [#allocation7], 4
      %s41 = int_to_ptr.vmem [resolvable:$true] %s40
      %46 = dma.hbm_to_vmem [thread:$0]  %s2, 256, %s41, [#allocation6], 128, 128, 8
    $region13: #{tpu_custom_call.1} parent=1 // pred_fallthru
      _
    // Predicated region
    $region14: #{tpu_custom_call.1} parent=1 // pred_check
      _
    $region15: #{tpu_custom_call.1} parent=1 // pred_check_branch
      %48 = sbr.rel (0) target = $region17
    $region16: #{tpu_custom_call.1} parent=1 // pred_region
      %49 = dma.done [#allocation3], 1024
    $region17: #{tpu_custom_call.1} parent=1 // pred_fallthru
      _
    // Predicated region
    $region18: #{tpu_custom_call.1} parent=1 // pred_check
      _
    $region19: #{tpu_custom_call.1} parent=1 // pred_check_branch
      %51 = sbr.rel (0) target = $region21
    $region20: #{tpu_custom_call.1} parent=1 // pred_region
      %52 = dma.done [#allocation6], 10240
    $region21: #{tpu_custom_call.1} parent=1 // pred_fallthru
      _
    // Predicated region
    $region22: #{tpu_custom_call.1} parent=1 // pred_check
      _
    $region23: #{tpu_custom_call.1} parent=1 // pred_check_branch
      %54 = sbr.rel (0) target = $region25
    $region24: #{tpu_custom_call.1} parent=1 // pred_region
      %55 = dma.done [#allocation6], 256
    $region25: #{tpu_custom_call.1} parent=1 // pred_fallthru
      _
    %v57 = vld [vmem:[#allocation2] sm:$0xf]
    %v58 = vld [vmem:[#allocation2 + $0x4] sm:$0xf]
    %v59 = vld [vmem:[#allocation2 + $0x8] sm:$0xf]
    %v60 = vld [vmem:[#allocation2 + $0xc] sm:$0xf]
    %v61 = vld [vmem:[#allocation2 + $0x10] sm:$0xf]
    %v62 = vld [vmem:[#allocation2 + $0x14] sm:$0xf]
    %v63 = vld [vmem:[#allocation2 + $0x18] sm:$0xf]
    %v64 = vld [vmem:[#allocation2 + $0x1c] sm:$0xf]
    %v65 = vld [vmem:[#allocation2 + $0x20] sm:$0xf]
    %v66 = vld [vmem:[#allocation2 + $0x24] sm:$0xf]
    %v67 = vld [vmem:[#allocation2 + $0x28] sm:$0xf]
    %v68 = vld [vmem:[#allocation2 + $0x2c] sm:$0xf]
    %v69 = vld [vmem:[#allocation2 + $0x30] sm:$0xf]
    %v70 = vld [vmem:[#allocation2 + $0x34] sm:$0xf]
    %v71 = vld [vmem:[#allocation2 + $0x38] sm:$0xf]
    %v72 = vld [vmem:[#allocation2 + $0x3c] sm:$0xf]
    %v73 = vld [vmem:[#allocation5] sm:$0xf]
    %v74 = vld [vmem:[#allocation5 + $0x8] sm:$0xf]
    %v75 = vld [vmem:[#allocation5 + $0x10] sm:$0xf]
    %v76 = vld [vmem:[#allocation5 + $0x18] sm:$0xf]
    %v77 = vld [vmem:[#allocation5 + $0x20] sm:$0xf]
    %v78 = vld [vmem:[#allocation5 + $0x28] sm:$0xf]
    %v79 = vld [vmem:[#allocation5 + $0x30] sm:$0xf]
    %v80 = vld [vmem:[#allocation5 + $0x38] sm:$0xf]
    %v81 = vld [vmem:[#allocation5 + $0x40] sm:$0xf]
    %v82 = vld [vmem:[#allocation5 + $0x48] sm:$0xf]
    %v83 = vld [vmem:[#allocation5 + $0x50] sm:$0xf]
    %v84 = vld [vmem:[#allocation5 + $0x58] sm:$0xf]
    %v85 = vld [vmem:[#allocation5 + $0x60] sm:$0xf]
    %v86 = vld [vmem:[#allocation5 + $0x68] sm:$0xf]
    %v87 = vld [vmem:[#allocation5 + $0x70] sm:$0xf]
    %v88 = vld [vmem:[#allocation5 + $0x78] sm:$0xf]
    %v105 = vunpack.c.l.b16 %v57
    %v106 = vunpack.c.l.b16 %v58
    %v107 = vunpack.c.l.b16 %v59
    %v108 = vunpack.c.l.b16 %v60
    %v109 = vunpack.c.l.b16 %v61
    %v110 = vunpack.c.l.b16 %v62
    %v111 = vunpack.c.l.b16 %v63
    %v112 = vunpack.c.l.b16 %v64
    %v113 = vunpack.c.l.b16 %v65
    %v114 = vunpack.c.l.b16 %v66
    %v115 = vunpack.c.l.b16 %v67
    %v116 = vunpack.c.l.b16 %v68
    %v117 = vunpack.c.l.b16 %v69
    %v118 = vunpack.c.l.b16 %v70
    %v119 = vunpack.c.l.b16 %v71
    %v120 = vunpack.c.l.b16 %v72
    %v121 = vpack.c.b16 %v106, %v105
    %v122 = vpack.c.b16 %v108, %v107
    %v123 = vpack.c.b16 %v110, %v109
    %v124 = vpack.c.b16 %v112, %v111
    %v125 = vpack.c.b16 %v114, %v113
    %v126 = vpack.c.b16 %v116, %v115
    %v127 = vpack.c.b16 %v118, %v117
    %v128 = vpack.c.b16 %v120, %v119
    %v153 = vunpack.c.l.b16 %v73
    %v154 = vunpack.c.l.b16 %v74
    %v155 = vunpack.c.l.b16 %v75
    %v156 = vunpack.c.l.b16 %v76
    %v157 = vunpack.c.l.b16 %v77
    %v158 = vunpack.c.l.b16 %v78
    %v159 = vunpack.c.l.b16 %v79
    %v160 = vunpack.c.l.b16 %v80
    %v161 = vunpack.c.l.b16 %v81
    %v162 = vunpack.c.l.b16 %v82
    %v163 = vunpack.c.l.b16 %v83
    %v164 = vunpack.c.l.b16 %v84
    %v165 = vunpack.c.l.b16 %v85
    %v166 = vunpack.c.l.b16 %v86
    %v167 = vunpack.c.l.b16 %v87
    %v168 = vunpack.c.l.b16 %v88
    %v169 = vpack.c.b16 %v154, %v153
    %v170 = vpack.c.b16 %v156, %v155
    %v171 = vpack.c.b16 %v158, %v157
    %v172 = vpack.c.b16 %v160, %v159
    %v173 = vpack.c.b16 %v162, %v161
    %v174 = vpack.c.b16 %v164, %v163
    %v175 = vpack.c.b16 %v166, %v165
    %v176 = vpack.c.b16 %v168, %v167
    %185 = vmatprep.subr.bf16.mxu0 0
    %186 = vmatpush1.bf16.msra.mxu0 %v169
    %187 = vmatprep.subr.bf16.mxu0 0
    %188 = vmatpush1.bf16.msra.mxu0 %v170
    %189 = vmatprep.subr.bf16.mxu0 0
    %190 = vmatpush1.bf16.msra.mxu0 %v171
    %191 = vmatprep.subr.bf16.mxu0 0
    %192 = vmatpush1.bf16.msra.mxu0 %v172
    %193 = vmatprep.subr.bf16.mxu0 0
    %194 = vmatpush1.bf16.msra.mxu0 %v173
    %195 = vmatprep.subr.bf16.mxu0 0
    %196 = vmatpush1.bf16.msra.mxu0 %v174
    %197 = vmatprep.subr.bf16.mxu0 0
    %198 = vmatpush1.bf16.msra.mxu0 %v175
    %199 = vmatprep.subr.bf16.mxu0 0
    %200 = vmatpush1.bf16.msra.mxu0 %v176
    %201 = vmatprep.subr.bf16.mxu0 0
    %202 = vmatpush1.bf16.msra.mxu0 0
    %203 = vmatprep.subr.bf16.mxu0 0
    %204 = vmatpush1.bf16.msra.mxu0 0
    %205 = vmatprep.subr.bf16.mxu0 0
    %206 = vmatpush1.bf16.msra.mxu0 0
    %207 = vmatprep.subr.bf16.mxu0 0
    %208 = vmatpush1.bf16.msra.mxu0 0
    %209 = vmatprep.subr.bf16.mxu0 0
    %210 = vmatpush1.bf16.msra.mxu0 0
    %211 = vmatprep.subr.bf16.mxu0 0
    %212 = vmatpush1.bf16.msra.mxu0 0
    %213 = vmatprep.subr.bf16.mxu0 0
    %214 = vmatpush1.bf16.msra.mxu0 0
    %215 = vmatprep.subr.bf16.mxu0 0
    %216 = vmatpush1.bf16.msra.mxu0 0
    %217 = vmatprep.mubr.bf16.mxu0 0
    %218 = vmatmul.mubr.bf16.gmra.mrb[0].mxu0 %v121
    %v219 = vpop.f32.mrb[0].mxu0
    %v220 = vadd.f32 0.0, %v219
    %v221 = vpop.f32.mrb[0].mxu0
    %v222 = vpop.f32.mrb[0].mxu0
    %v223 = vadd.f32 0.0, %v222
    %v224 = vpop.f32.mrb[0].mxu0
    %225 = vmatprep.mubr.bf16.mxu0 0
    %226 = vmatmul.mubr.bf16.gmra.mrb[0].mxu0 %v122
    %v227 = vpop.f32.mrb[0].mxu0
    %v228 = vadd.f32 0.0, %v227
    %v229 = vpop.f32.mrb[0].mxu0
    %v230 = vpop.f32.mrb[0].mxu0
    %v231 = vadd.f32 0.0, %v230
    %v232 = vpop.f32.mrb[0].mxu0
    %233 = vmatprep.mubr.bf16.mxu0 0
    %234 = vmatmul.mubr.bf16.gmra.mrb[0].mxu0 %v123
    %v235 = vpop.f32.mrb[0].mxu0
    %v236 = vadd.f32 0.0, %v235
    %v237 = vpop.f32.mrb[0].mxu0
    %v238 = vpop.f32.mrb[0].mxu0
    %v239 = vadd.f32 0.0, %v238
    %v240 = vpop.f32.mrb[0].mxu0
    %241 = vmatprep.mubr.bf16.mxu0 0
    %242 = vmatmul.mubr.bf16.gmra.mrb[0].mxu0 %v124
    %v243 = vpop.f32.mrb[0].mxu0
    %v244 = vadd.f32 0.0, %v243
    %v245 = vpop.f32.mrb[0].mxu0
    %v246 = vpop.f32.mrb[0].mxu0
    %v247 = vadd.f32 0.0, %v246
    %v248 = vpop.f32.mrb[0].mxu0
    %249 = vmatprep.mubr.bf16.mxu0 0
    %250 = vmatmul.mubr.bf16.gmra.mrb[0].mxu0 %v125
    %v251 = vpop.f32.mrb[0].mxu0
    %v252 = vadd.f32 0.0, %v251
    %v253 = vpop.f32.mrb[0].mxu0
    %v254 = vpop.f32.mrb[0].mxu0
    %v255 = vadd.f32 0.0, %v254
    %v256 = vpop.f32.mrb[0].mxu0
    %257 = vmatprep.mubr.bf16.mxu0 0
    %258 = vmatmul.mubr.bf16.gmra.mrb[0].mxu0 %v126
    %v259 = vpop.f32.mrb[0].mxu0
    %v260 = vadd.f32 0.0, %v259
    %v261 = vpop.f32.mrb[0].mxu0
    %v262 = vpop.f32.mrb[0].mxu0
    %v263 = vadd.f32 0.0, %v262
    %v264 = vpop.f32.mrb[0].mxu0
    %265 = vmatprep.mubr.bf16.mxu0 0
    %266 = vmatmul.mubr.bf16.gmra.mrb[0].mxu0 %v127
    %v267 = vpop.f32.mrb[0].mxu0
    %v268 = vadd.f32 0.0, %v267
    %v269 = vpop.f32.mrb[0].mxu0
    %v270 = vpop.f32.mrb[0].mxu0
    %v271 = vadd.f32 0.0, %v270
    %v272 = vpop.f32.mrb[0].mxu0
    %273 = vmatprep.mubr.bf16.mxu0 0
    %274 = vmatmul.mubr.bf16.gmra.mrb[0].mxu0 %v128
    %v275 = vpop.f32.mrb[0].mxu0
    %v276 = vadd.f32 0.0, %v275
    %v277 = vpop.f32.mrb[0].mxu0
    %v278 = vpop.f32.mrb[0].mxu0
    %v279 = vadd.f32 0.0, %v278
    %v280 = vpop.f32.mrb[0].mxu0
    %281 = vdwg.mxu0
    %v282 = vld [vmem:[#allocation7] sm:$0x1]
    %v283 = vld [vmem:[#allocation7 + $0x1] sm:$0x1]
    %v284 = vadd.f32 %v220, %v223
    %v285 = vadd.f32 %v284, %v228
    %v286 = vadd.f32 %v285, %v231
    %v287 = vadd.f32 %v286, %v236
    %v288 = vadd.f32 %v287, %v239
    %v289 = vadd.f32 %v288, %v244
    %v290 = vadd.f32 %v289, %v247
    %v291 = vadd.f32 %v290, %v252
    %v292 = vadd.f32 %v291, %v255
    %v293 = vadd.f32 %v292, %v260
    %v294 = vadd.f32 %v293, %v263
    %v295 = vadd.f32 %v294, %v268
    %v296 = vadd.f32 %v295, %v271
    %v297 = vadd.f32 %v296, %v276
    %v298 = vadd.f32 %v297, %v279
    %v299 = vrot.slane %v298, 4
    %v300 = vadd.f32 %v298, %v299
    %v301 = vrot.slane %v300, 2
    %v302 = vadd.f32 %v300, %v301
    %v303 = vrot.slane %v302, 1
    %v304 = vadd.f32 %v302, %v303
    %v305 = vmul.f32 %v220, %v220
    %v306 = vmul.f32 %v223, %v223
    %v307 = vmul.f32 %v228, %v228
    %v308 = vmul.f32 %v231, %v231
    %v309 = vmul.f32 %v236, %v236
    %v310 = vmul.f32 %v239, %v239
    %v311 = vmul.f32 %v244, %v244
    %v312 = vmul.f32 %v247, %v247
    %v313 = vmul.f32 %v252, %v252
    %v314 = vmul.f32 %v255, %v255
    %v315 = vmul.f32 %v260, %v260
    %v316 = vmul.f32 %v263, %v263
    %v317 = vmul.f32 %v268, %v268
    %v318 = vmul.f32 %v271, %v271
    %v319 = vmul.f32 %v276, %v276
    %v320 = vmul.f32 %v279, %v279
    %v321 = vadd.f32 %v305, %v306
    %v322 = vadd.f32 %v321, %v307
    %v323 = vadd.f32 %v322, %v308
    %v324 = vadd.f32 %v323, %v309
    %v325 = vadd.f32 %v324, %v310
    %v326 = vadd.f32 %v325, %v311
    %v327 = vadd.f32 %v326, %v312
    %v328 = vadd.f32 %v327, %v313
    %v329 = vadd.f32 %v328, %v314
    %v330 = vadd.f32 %v329, %v315
    %v331 = vadd.f32 %v330, %v316
    %v332 = vadd.f32 %v331, %v317
    %v333 = vadd.f32 %v332, %v318
    %v334 = vadd.f32 %v333, %v319
    %v335 = vadd.f32 %v334, %v320
    %v336 = vrot.slane %v335, 4
    %v337 = vadd.f32 %v335, %v336
    %v338 = vrot.slane %v337, 2
    %v339 = vadd.f32 %v337, %v338
    %v340 = vrot.slane %v339, 1
    %v341 = vadd.f32 %v339, %v340
    %v342 = vmul.f32 %v304, 0.0078125
    %v343 = vmul.f32 %v341, 0.0078125
    %v344 = vmul.f32 %v342, %v342
    %v345 = vsub.f32 %v343, %v344
    %v346 = vmax.f32 %v345, 0.0
    %v347 = vadd.f32 %v346, 1e-05
    %v348 = vrsqrt.pop %v347
    %v349 = vmul.f32 %v282, %v348
    %v350 = vlaneseq
    %v351 = vshrl.u32 %v350, 7
    %v352 = vsub.s32 0, %v351
    %v353 = vrot.slane %v349, %v352
    %v354 = vmul.f32 %v220, %v353
    %v355 = vmul.f32 %v223, %v353
    %v356 = vmul.f32 %v228, %v353
    %v357 = vmul.f32 %v231, %v353
    %v358 = vmul.f32 %v236, %v353
    %v359 = vmul.f32 %v239, %v353
    %v360 = vmul.f32 %v244, %v353
    %v361 = vmul.f32 %v247, %v353
    %v362 = vmul.f32 %v252, %v353
    %v363 = vmul.f32 %v255, %v353
    %v364 = vmul.f32 %v260, %v353
    %v365 = vmul.f32 %v263, %v353
    %v366 = vmul.f32 %v268, %v353
    %v367 = vmul.f32 %v271, %v353
    %v368 = vmul.f32 %v276, %v353
    %v369 = vmul.f32 %v279, %v353
    %v370 = vmul.f32 %v342, %v349
    %v371 = vsub.f32 %v283, %v370
    %v372 = vlaneseq
    %v373 = vshrl.u32 %v372, 7
    %v374 = vsub.s32 0, %v373
    %v375 = vrot.slane %v371, %v374
    %v376 = vadd.f32 %v354, %v375
    %v377 = vadd.f32 %v355, %v375
    %v378 = vadd.f32 %v356, %v375
    %v379 = vadd.f32 %v357, %v375
    %v380 = vadd.f32 %v358, %v375
    %v381 = vadd.f32 %v359, %v375
    %v382 = vadd.f32 %v360, %v375
    %v383 = vadd.f32 %v361, %v375
    %v384 = vadd.f32 %v362, %v375
    %v385 = vadd.f32 %v363, %v375
    %v386 = vadd.f32 %v364, %v375
    %v387 = vadd.f32 %v365, %v375
    %v388 = vadd.f32 %v366, %v375
    %v389 = vadd.f32 %v367, %v375
    %v390 = vadd.f32 %v368, %v375
    %v391 = vadd.f32 %v369, %v375
    %v392 = vmax.f32 %v376, 0.0
    %v393 = vmax.f32 %v377, 0.0
    %v394 = vmax.f32 %v378, 0.0
    %v395 = vmax.f32 %v379, 0.0
    %v396 = vmax.f32 %v380, 0.0
    %v397 = vmax.f32 %v381, 0.0
    %v398 = vmax.f32 %v382, 0.0
    %v399 = vmax.f32 %v383, 0.0
    %v400 = vmax.f32 %v384, 0.0
    %v401 = vmax.f32 %v385, 0.0
    %v402 = vmax.f32 %v386, 0.0
    %v403 = vmax.f32 %v387, 0.0
    %v404 = vmax.f32 %v388, 0.0
    %v405 = vmax.f32 %v389, 0.0
    %v406 = vmax.f32 %v390, 0.0
    %v407 = vmax.f32 %v391, 0.0
    %v408 = vpack.c.bf16 %v393, %v392
    %v409 = vpack.c.bf16 %v395, %v394
    %v410 = vpack.c.bf16 %v397, %v396
    %v411 = vpack.c.bf16 %v399, %v398
    %v412 = vpack.c.bf16 %v401, %v400
    %v413 = vpack.c.bf16 %v403, %v402
    %v414 = vpack.c.bf16 %v405, %v404
    %v415 = vpack.c.bf16 %v407, %v406
    %s416 = scalar_lea.vmem [#allocation5], 128
    %v417 = vld [vmem:[%s416] sm:$0xf]
    %v418 = vld [vmem:[%s416 + $0x8] sm:$0xf]
    %v419 = vld [vmem:[%s416 + $0x10] sm:$0xf]
    %v420 = vld [vmem:[%s416 + $0x18] sm:$0xf]
    %v421 = vld [vmem:[%s416 + $0x20] sm:$0xf]
    %v422 = vld [vmem:[%s416 + $0x28] sm:$0xf]
    %v423 = vld [vmem:[%s416 + $0x30] sm:$0xf]
    %v424 = vld [vmem:[%s416 + $0x38] sm:$0xf]
    %v425 = vld [vmem:[%s416 + $0x40] sm:$0xf]
    %v426 = vld [vmem:[%s416 + $0x48] sm:$0xf]
    %v427 = vld [vmem:[%s416 + $0x50] sm:$0xf]
    %v428 = vld [vmem:[%s416 + $0x58] sm:$0xf]
    %v429 = vld [vmem:[%s416 + $0x60] sm:$0xf]
    %v430 = vld [vmem:[%s416 + $0x68] sm:$0xf]
    %v431 = vld [vmem:[%s416 + $0x70] sm:$0xf]
    %v432 = vld [vmem:[%s416 + $0x78] sm:$0xf]
    %v433 = vld [vmem:[#allocation7 + $0x2] sm:$0x1]
    %v434 = vlaneseq
    %v435 = vshrl.u32 %v434, 7
    %v436 = vsub.s32 0, %v435
    %v437 = vrot.slane %v433, %v436
    %v454 = vunpack.c.l.b16 %v417
    %v455 = vunpack.c.l.b16 %v418
    %v456 = vunpack.c.l.b16 %v419
    %v457 = vunpack.c.l.b16 %v420
    %v458 = vunpack.c.l.b16 %v421
    %v459 = vunpack.c.l.b16 %v422
    %v460 = vunpack.c.l.b16 %v423
    %v461 = vunpack.c.l.b16 %v424
    %v462 = vunpack.c.l.b16 %v425
    %v463 = vunpack.c.l.b16 %v426
    %v464 = vunpack.c.l.b16 %v427
    %v465 = vunpack.c.l.b16 %v428
    %v466 = vunpack.c.l.b16 %v429
    %v467 = vunpack.c.l.b16 %v430
    %v468 = vunpack.c.l.b16 %v431
    %v469 = vunpack.c.l.b16 %v432
    %v470 = vpack.c.b16 %v455, %v454
    %v471 = vpack.c.b16 %v457, %v456
    %v472 = vpack.c.b16 %v459, %v458
    %v473 = vpack.c.b16 %v461, %v460
    %v474 = vpack.c.b16 %v463, %v462
    %v475 = vpack.c.b16 %v465, %v464
    %v476 = vpack.c.b16 %v467, %v466
    %v477 = vpack.c.b16 %v469, %v468
    %486 = vmatprep.subr.bf16.mxu0 0
    %487 = vmatpush1.bf16.msra.mxu0 %v470
    %488 = vmatprep.subr.bf16.mxu0 0
    %489 = vmatpush1.bf16.msra.mxu0 %v471
    %490 = vmatprep.subr.bf16.mxu0 0
    %491 = vmatpush1.bf16.msra.mxu0 %v472
    %492 = vmatprep.subr.bf16.mxu0 0
    %493 = vmatpush1.bf16.msra.mxu0 %v473
    %494 = vmatprep.subr.bf16.mxu0 0
    %495 = vmatpush1.bf16.msra.mxu0 %v474
    %496 = vmatprep.subr.bf16.mxu0 0
    %497 = vmatpush1.bf16.msra.mxu0 %v475
    %498 = vmatprep.subr.bf16.mxu0 0
    %499 = vmatpush1.bf16.msra.mxu0 %v476
    %500 = vmatprep.subr.bf16.mxu0 0
    %501 = vmatpush1.bf16.msra.mxu0 %v477
    %502 = vmatprep.subr.bf16.mxu0 0
    %503 = vmatpush1.bf16.msra.mxu0 0
    %504 = vmatprep.subr.bf16.mxu0 0
    %505 = vmatpush1.bf16.msra.mxu0 0
    %506 = vmatprep.subr.bf16.mxu0 0
    %507 = vmatpush1.bf16.msra.mxu0 0
    %508 = vmatprep.subr.bf16.mxu0 0
    %509 = vmatpush1.bf16.msra.mxu0 0
    %510 = vmatprep.subr.bf16.mxu0 0
    %511 = vmatpush1.bf16.msra.mxu0 0
    %512 = vmatprep.subr.bf16.mxu0 0
    %513 = vmatpush1.bf16.msra.mxu0 0
    %514 = vmatprep.subr.bf16.mxu0 0
    %515 = vmatpush1.bf16.msra.mxu0 0
    %516 = vmatprep.subr.bf16.mxu0 0
    %517 = vmatpush1.bf16.msra.mxu0 0
    %518 = vmatprep.mubr.bf16.mxu0 0
    %519 = vmatmul.mubr.bf16.gmra.mrb[0].mxu0 %v408
    %v520 = vpop.f32.mrb[0].mxu0
    %v521 = vadd.f32 %v437, %v520
    %v522 = vpop.f32.mrb[0].mxu0
    %v523 = vpop.f32.mrb[0].mxu0
    %v524 = vadd.f32 %v437, %v523
    %v525 = vpop.f32.mrb[0].mxu0
    %526 = vmatprep.mubr.bf16.mxu0 0
    %527 = vmatmul.mubr.bf16.gmra.mrb[0].mxu0 %v409
    %v528 = vpop.f32.mrb[0].mxu0
    %v529 = vadd.f32 %v437, %v528
    %v530 = vpop.f32.mrb[0].mxu0
    %v531 = vpop.f32.mrb[0].mxu0
    %v532 = vadd.f32 %v437, %v531
    %v533 = vpop.f32.mrb[0].mxu0
    %534 = vmatprep.mubr.bf16.mxu0 0
    %535 = vmatmul.mubr.bf16.gmra.mrb[0].mxu0 %v410
    %v536 = vpop.f32.mrb[0].mxu0
    %v537 = vadd.f32 %v437, %v536
    %v538 = vpop.f32.mrb[0].mxu0
    %v539 = vpop.f32.mrb[0].mxu0
    %v540 = vadd.f32 %v437, %v539
    %v541 = vpop.f32.mrb[0].mxu0
    %542 = vmatprep.mubr.bf16.mxu0 0
    %543 = vmatmul.mubr.bf16.gmra.mrb[0].mxu0 %v411
    %v544 = vpop.f32.mrb[0].mxu0
    %v545 = vadd.f32 %v437, %v544
    %v546 = vpop.f32.mrb[0].mxu0
    %v547 = vpop.f32.mrb[0].mxu0
    %v548 = vadd.f32 %v437, %v547
    %v549 = vpop.f32.mrb[0].mxu0
    %550 = vmatprep.mubr.bf16.mxu0 0
    %551 = vmatmul.mubr.bf16.gmra.mrb[0].mxu0 %v412
    %v552 = vpop.f32.mrb[0].mxu0
    %v553 = vadd.f32 %v437, %v552
    %v554 = vpop.f32.mrb[0].mxu0
    %v555 = vpop.f32.mrb[0].mxu0
    %v556 = vadd.f32 %v437, %v555
    %v557 = vpop.f32.mrb[0].mxu0
    %558 = vmatprep.mubr.bf16.mxu0 0
    %559 = vmatmul.mubr.bf16.gmra.mrb[0].mxu0 %v413
    %v560 = vpop.f32.mrb[0].mxu0
    %v561 = vadd.f32 %v437, %v560
    %v562 = vpop.f32.mrb[0].mxu0
    %v563 = vpop.f32.mrb[0].mxu0
    %v564 = vadd.f32 %v437, %v563
    %v565 = vpop.f32.mrb[0].mxu0
    %566 = vmatprep.mubr.bf16.mxu0 0
    %567 = vmatmul.mubr.bf16.gmra.mrb[0].mxu0 %v414
    %v568 = vpop.f32.mrb[0].mxu0
    %v569 = vadd.f32 %v437, %v568
    %v570 = vpop.f32.mrb[0].mxu0
    %v571 = vpop.f32.mrb[0].mxu0
    %v572 = vadd.f32 %v437, %v571
    %v573 = vpop.f32.mrb[0].mxu0
    %574 = vmatprep.mubr.bf16.mxu0 0
    %575 = vmatmul.mubr.bf16.gmra.mrb[0].mxu0 %v415
    %v576 = vpop.f32.mrb[0].mxu0
    %v577 = vadd.f32 %v437, %v576
    %v578 = vpop.f32.mrb[0].mxu0
    %v579 = vpop.f32.mrb[0].mxu0
    %v580 = vadd.f32 %v437, %v579
    %v581 = vpop.f32.mrb[0].mxu0
    %582 = vdwg.mxu0
    %v583 = vpack.c.bf16 %v524, %v521
    %v584 = vpack.c.bf16 %v532, %v529
    %v585 = vpack.c.bf16 %v540, %v537
    %v586 = vpack.c.bf16 %v548, %v545
    %v587 = vpack.c.bf16 %v556, %v553
    %v588 = vpack.c.bf16 %v564, %v561
    %v589 = vpack.c.bf16 %v572, %v569
    %v590 = vpack.c.bf16 %v580, %v577
    %s591 = scalar_lea.vmem [#allocation5], 256
    %v592 = vld [vmem:[%s591] sm:$0xff]
    %v593 = vld [vmem:[%s591 + $0x8] sm:$0xff]
    %v594 = vld [vmem:[%s591 + $0x10] sm:$0xff]
    %v595 = vld [vmem:[%s591 + $0x18] sm:$0xff]
    %v596 = vld [vmem:[%s591 + $0x20] sm:$0xff]
    %v597 = vld [vmem:[%s591 + $0x28] sm:$0xff]
    %v598 = vld [vmem:[%s591 + $0x30] sm:$0xff]
    %v599 = vld [vmem:[%s591 + $0x38] sm:$0xff]
    %v600 = vld [vmem:[%s591 + $0x40] sm:$0xff]
    %v601 = vld [vmem:[%s591 + $0x48] sm:$0xff]
    %v602 = vld [vmem:[%s591 + $0x50] sm:$0xff]
    %v603 = vld [vmem:[%s591 + $0x58] sm:$0xff]
    %v604 = vld [vmem:[%s591 + $0x60] sm:$0xff]
    %v605 = vld [vmem:[%s591 + $0x68] sm:$0xff]
    %v606 = vld [vmem:[%s591 + $0x70] sm:$0xff]
    %v607 = vld [vmem:[%s591 + $0x78] sm:$0xff]
    %v624 = vunpack.c.l.b16 %v592
    %v625 = vunpack.c.h.b16 %v592
    %v626 = vunpack.c.l.b16 %v593
    %v627 = vunpack.c.h.b16 %v593
    %v628 = vunpack.c.l.b16 %v594
    %v629 = vunpack.c.h.b16 %v594
    %v630 = vunpack.c.l.b16 %v595
    %v631 = vunpack.c.h.b16 %v595
    %v632 = vunpack.c.l.b16 %v596
    %v633 = vunpack.c.h.b16 %v596
    %v634 = vunpack.c.l.b16 %v597
    %v635 = vunpack.c.h.b16 %v597
    %v636 = vunpack.c.l.b16 %v598
    %v637 = vunpack.c.h.b16 %v598
    %v638 = vunpack.c.l.b16 %v599
    %v639 = vunpack.c.h.b16 %v599
    %v640 = vunpack.c.l.b16 %v600
    %v641 = vunpack.c.h.b16 %v600
    %v642 = vunpack.c.l.b16 %v601
    %v643 = vunpack.c.h.b16 %v601
    %v644 = vunpack.c.l.b16 %v602
    %v645 = vunpack.c.h.b16 %v602
    %v646 = vunpack.c.l.b16 %v603
    %v647 = vunpack.c.h.b16 %v603
    %v648 = vunpack.c.l.b16 %v604
    %v649 = vunpack.c.h.b16 %v604
    %v650 = vunpack.c.l.b16 %v605
    %v651 = vunpack.c.h.b16 %v605
    %v652 = vunpack.c.l.b16 %v606
    %v653 = vunpack.c.h.b16 %v606
    %v654 = vunpack.c.l.b16 %v607
    %v655 = vunpack.c.h.b16 %v607
    %v656 = vpack.c.b16 %v626, %v624
    %v657 = vpack.c.b16 %v627, %v625
    %v658 = vpack.c.b16 %v630, %v628
    %v659 = vpack.c.b16 %v631, %v629
    %v660 = vpack.c.b16 %v634, %v632
    %v661 = vpack.c.b16 %v635, %v633
    %v662 = vpack.c.b16 %v638, %v636
    %v663 = vpack.c.b16 %v639, %v637
    %v664 = vpack.c.b16 %v642, %v640
    %v665 = vpack.c.b16 %v643, %v641
    %v666 = vpack.c.b16 %v646, %v644
    %v667 = vpack.c.b16 %v647, %v645
    %v668 = vpack.c.b16 %v650, %v648
    %v669 = vpack.c.b16 %v651, %v649
    %v670 = vpack.c.b16 %v654, %v652
    %v671 = vpack.c.b16 %v655, %v653
    %688 = vmatprep.subr.bf16.mxu0 %v657
    %689 = vmatpush1.bf16.msra.mxu0 %v656
    %690 = vmatprep.subr.bf16.mxu0 %v659
    %691 = vmatpush1.bf16.msra.mxu0 %v658
    %692 = vmatprep.subr.bf16.mxu0 %v661
    %693 = vmatpush1.bf16.msra.mxu0 %v660
    %694 = vmatprep.subr.bf16.mxu0 %v663
    %695 = vmatpush1.bf16.msra.mxu0 %v662
    %696 = vmatprep.subr.bf16.mxu0 %v665
    %697 = vmatpush1.bf16.msra.mxu0 %v664
    %698 = vmatprep.subr.bf16.mxu0 %v667
    %699 = vmatpush1.bf16.msra.mxu0 %v666
    %700 = vmatprep.subr.bf16.mxu0 %v669
    %701 = vmatpush1.bf16.msra.mxu0 %v668
    %702 = vmatprep.subr.bf16.mxu0 %v671
    %703 = vmatpush1.bf16.msra.mxu0 %v670
    %704 = vmatprep.subr.bf16.mxu0 0
    %705 = vmatpush1.bf16.msra.mxu0 0
    %706 = vmatprep.subr.bf16.mxu0 0
    %707 = vmatpush1.bf16.msra.mxu0 0
    %708 = vmatprep.subr.bf16.mxu0 0
    %709 = vmatpush1.bf16.msra.mxu0 0
    %710 = vmatprep.subr.bf16.mxu0 0
    %711 = vmatpush1.bf16.msra.mxu0 0
    %712 = vmatprep.subr.bf16.mxu0 0
    %713 = vmatpush1.bf16.msra.mxu0 0
    %714 = vmatprep.subr.bf16.mxu0 0
    %715 = vmatpush1.bf16.msra.mxu0 0
    %716 = vmatprep.subr.bf16.mxu0 0
    %717 = vmatpush1.bf16.msra.mxu0 0
    %718 = vmatprep.subr.bf16.mxu0 0
    %719 = vmatpush1.bf16.msra.mxu0 0
    %720 = vmatprep.mubr.bf16.mxu0 0
    %721 = vmatmul.mubr.bf16.gmra.mrb[0].mxu0 %v583
    %v722 = vpop.f32.mrb[0].mxu0
    %v723 = vadd.f32 0.0, %v722
    %v724 = vpop.f32.mrb[0].mxu0
    %v725 = vadd.f32 0.0, %v724
    %v726 = vpop.f32.mrb[0].mxu0
    %v727 = vadd.f32 0.0, %v726
    %v728 = vpop.f32.mrb[0].mxu0
    %v729 = vadd.f32 0.0, %v728
    %730 = vmatprep.mubr.bf16.mxu0 0
    %731 = vmatmul.mubr.bf16.gmra.mrb[0].mxu0 %v584
    %v732 = vpop.f32.mrb[0].mxu0
    %v733 = vadd.f32 0.0, %v732
    %v734 = vpop.f32.mrb[0].mxu0
    %v735 = vadd.f32 0.0, %v734
    %v736 = vpop.f32.mrb[0].mxu0
    %v737 = vadd.f32 0.0, %v736
    %v738 = vpop.f32.mrb[0].mxu0
    %v739 = vadd.f32 0.0, %v738
    %740 = vmatprep.mubr.bf16.mxu0 0
    %741 = vmatmul.mubr.bf16.gmra.mrb[0].mxu0 %v585
    %v742 = vpop.f32.mrb[0].mxu0
    %v743 = vadd.f32 0.0, %v742
    %v744 = vpop.f32.mrb[0].mxu0
    %v745 = vadd.f32 0.0, %v744
    %v746 = vpop.f32.mrb[0].mxu0
    %v747 = vadd.f32 0.0, %v746
    %v748 = vpop.f32.mrb[0].mxu0
    %v749 = vadd.f32 0.0, %v748
    %750 = vmatprep.mubr.bf16.mxu0 0
    %751 = vmatmul.mubr.bf16.gmra.mrb[0].mxu0 %v586
    %v752 = vpop.f32.mrb[0].mxu0
    %v753 = vadd.f32 0.0, %v752
    %v754 = vpop.f32.mrb[0].mxu0
    %v755 = vadd.f32 0.0, %v754
    %v756 = vpop.f32.mrb[0].mxu0
    %v757 = vadd.f32 0.0, %v756
    %v758 = vpop.f32.mrb[0].mxu0
    %v759 = vadd.f32 0.0, %v758
    %760 = vmatprep.mubr.bf16.mxu0 0
    %761 = vmatmul.mubr.bf16.gmra.mrb[0].mxu0 %v587
    %v762 = vpop.f32.mrb[0].mxu0
    %v763 = vadd.f32 0.0, %v762
    %v764 = vpop.f32.mrb[0].mxu0
    %v765 = vadd.f32 0.0, %v764
    %v766 = vpop.f32.mrb[0].mxu0
    %v767 = vadd.f32 0.0, %v766
    %v768 = vpop.f32.mrb[0].mxu0
    %v769 = vadd.f32 0.0, %v768
    %770 = vmatprep.mubr.bf16.mxu0 0
    %771 = vmatmul.mubr.bf16.gmra.mrb[0].mxu0 %v588
    %v772 = vpop.f32.mrb[0].mxu0
    %v773 = vadd.f32 0.0, %v772
    %v774 = vpop.f32.mrb[0].mxu0
    %v775 = vadd.f32 0.0, %v774
    %v776 = vpop.f32.mrb[0].mxu0
    %v777 = vadd.f32 0.0, %v776
    %v778 = vpop.f32.mrb[0].mxu0
    %v779 = vadd.f32 0.0, %v778
    %780 = vmatprep.mubr.bf16.mxu0 0
    %781 = vmatmul.mubr.bf16.gmra.mrb[0].mxu0 %v589
    %v782 = vpop.f32.mrb[0].mxu0
    %v783 = vadd.f32 0.0, %v782
    %v784 = vpop.f32.mrb[0].mxu0
    %v785 = vadd.f32 0.0, %v784
    %v786 = vpop.f32.mrb[0].mxu0
    %v787 = vadd.f32 0.0, %v786
    %v788 = vpop.f32.mrb[0].mxu0
    %v789 = vadd.f32 0.0, %v788
    %790 = vmatprep.mubr.bf16.mxu0 0
    %791 = vmatmul.mubr.bf16.gmra.mrb[0].mxu0 %v590
    %v792 = vpop.f32.mrb[0].mxu0
    %v793 = vadd.f32 0.0, %v792
    %v794 = vpop.f32.mrb[0].mxu0
    %v795 = vadd.f32 0.0, %v794
    %v796 = vpop.f32.mrb[0].mxu0
    %v797 = vadd.f32 0.0, %v796
    %v798 = vpop.f32.mrb[0].mxu0
    %v799 = vadd.f32 0.0, %v798
    %800 = vdwg.mxu0
    %v801 = vld [vmem:[#allocation7 + $0x3] sm:$0x1]
    %v802 = vld [vmem:[#allocation7 + $0x4] sm:$0x1]
    %v803 = vld [vmem:[#allocation7 + $0x5] sm:$0x1]
    %v804 = vld [vmem:[#allocation7 + $0x6] sm:$0x1]
    %v805 = vadd.f32 %v723, %v727
    %v806 = vadd.f32 %v805, %v733
    %v807 = vadd.f32 %v806, %v737
    %v808 = vadd.f32 %v807, %v743
    %v809 = vadd.f32 %v808, %v747
    %v810 = vadd.f32 %v809, %v753
    %v811 = vadd.f32 %v810, %v757
    %v812 = vadd.f32 %v811, %v763
    %v813 = vadd.f32 %v812, %v767
    %v814 = vadd.f32 %v813, %v773
    %v815 = vadd.f32 %v814, %v777
    %v816 = vadd.f32 %v815, %v783
    %v817 = vadd.f32 %v816, %v787
    %v818 = vadd.f32 %v817, %v793
    %v819 = vadd.f32 %v818, %v797
    %v820 = vrot.slane %v819, 4
    %v821 = vadd.f32 %v819, %v820
    %v822 = vrot.slane %v821, 2
    %v823 = vadd.f32 %v821, %v822
    %v824 = vrot.slane %v823, 1
    %v825 = vadd.f32 %v823, %v824
    %v826 = vmul.f32 %v723, %v723
    %v827 = vmul.f32 %v727, %v727
    %v828 = vmul.f32 %v733, %v733
    %v829 = vmul.f32 %v737, %v737
    %v830 = vmul.f32 %v743, %v743
    %v831 = vmul.f32 %v747, %v747
    %v832 = vmul.f32 %v753, %v753
    %v833 = vmul.f32 %v757, %v757
    %v834 = vmul.f32 %v763, %v763
    %v835 = vmul.f32 %v767, %v767
    %v836 = vmul.f32 %v773, %v773
    %v837 = vmul.f32 %v777, %v777
    %v838 = vmul.f32 %v783, %v783
    %v839 = vmul.f32 %v787, %v787
    %v840 = vmul.f32 %v793, %v793
    %v841 = vmul.f32 %v797, %v797
    %v842 = vadd.f32 %v826, %v827
    %v843 = vadd.f32 %v842, %v828
    %v844 = vadd.f32 %v843, %v829
    %v845 = vadd.f32 %v844, %v830
    %v846 = vadd.f32 %v845, %v831
    %v847 = vadd.f32 %v846, %v832
    %v848 = vadd.f32 %v847, %v833
    %v849 = vadd.f32 %v848, %v834
    %v850 = vadd.f32 %v849, %v835
    %v851 = vadd.f32 %v850, %v836
    %v852 = vadd.f32 %v851, %v837
    %v853 = vadd.f32 %v852, %v838
    %v854 = vadd.f32 %v853, %v839
    %v855 = vadd.f32 %v854, %v840
    %v856 = vadd.f32 %v855, %v841
    %v857 = vrot.slane %v856, 4
    %v858 = vadd.f32 %v856, %v857
    %v859 = vrot.slane %v858, 2
    %v860 = vadd.f32 %v858, %v859
    %v861 = vrot.slane %v860, 1
    %v862 = vadd.f32 %v860, %v861
    %v863 = vmul.f32 %v825, 0.0078125
    %v864 = vmul.f32 %v862, 0.0078125
    %v865 = vmul.f32 %v863, %v863
    %v866 = vsub.f32 %v864, %v865
    %v867 = vmax.f32 %v866, 0.0
    %v868 = vadd.f32 %v867, 1e-05
    %v869 = vrsqrt.pop %v868
    %v870 = vmul.f32 %v801, %v869
    %v871 = vlaneseq
    %v872 = vshrl.u32 %v871, 7
    %v873 = vsub.s32 0, %v872
    %v874 = vrot.slane %v870, %v873
    %v875 = vmul.f32 %v723, %v874
    %v876 = vmul.f32 %v727, %v874
    %v877 = vmul.f32 %v733, %v874
    %v878 = vmul.f32 %v737, %v874
    %v879 = vmul.f32 %v743, %v874
    %v880 = vmul.f32 %v747, %v874
    %v881 = vmul.f32 %v753, %v874
    %v882 = vmul.f32 %v757, %v874
    %v883 = vmul.f32 %v763, %v874
    %v884 = vmul.f32 %v767, %v874
    %v885 = vmul.f32 %v773, %v874
    %v886 = vmul.f32 %v777, %v874
    %v887 = vmul.f32 %v783, %v874
    %v888 = vmul.f32 %v787, %v874
    %v889 = vmul.f32 %v793, %v874
    %v890 = vmul.f32 %v797, %v874
    %v891 = vmul.f32 %v863, %v870
    %v892 = vsub.f32 %v802, %v891
    %v893 = vlaneseq
    %v894 = vshrl.u32 %v893, 7
    %v895 = vsub.s32 0, %v894
    %v896 = vrot.slane %v892, %v895
    %v897 = vadd.f32 %v875, %v896
    %v898 = vadd.f32 %v876, %v896
    %v899 = vadd.f32 %v877, %v896
    %v900 = vadd.f32 %v878, %v896
    %v901 = vadd.f32 %v879, %v896
    %v902 = vadd.f32 %v880, %v896
    %v903 = vadd.f32 %v881, %v896
    %v904 = vadd.f32 %v882, %v896
    %v905 = vadd.f32 %v883, %v896
    %v906 = vadd.f32 %v884, %v896
    %v907 = vadd.f32 %v885, %v896
    %v908 = vadd.f32 %v886, %v896
    %v909 = vadd.f32 %v887, %v896
    %v910 = vadd.f32 %v888, %v896
    %v911 = vadd.f32 %v889, %v896
    %v912 = vadd.f32 %v890, %v896
    %v913 = vmax.f32 %v897, 0.0
    %v914 = vmax.f32 %v898, 0.0
    %v915 = vmax.f32 %v899, 0.0
    %v916 = vmax.f32 %v900, 0.0
    %v917 = vmax.f32 %v901, 0.0
    %v918 = vmax.f32 %v902, 0.0
    %v919 = vmax.f32 %v903, 0.0
    %v920 = vmax.f32 %v904, 0.0
    %v921 = vmax.f32 %v905, 0.0
    %v922 = vmax.f32 %v906, 0.0
    %v923 = vmax.f32 %v907, 0.0
    %v924 = vmax.f32 %v908, 0.0
    %v925 = vmax.f32 %v909, 0.0
    %v926 = vmax.f32 %v910, 0.0
    %v927 = vmax.f32 %v911, 0.0
    %v928 = vmax.f32 %v912, 0.0
    %v929 = vadd.f32 %v725, %v729
    %v930 = vadd.f32 %v929, %v735
    %v931 = vadd.f32 %v930, %v739
    %v932 = vadd.f32 %v931, %v745
    %v933 = vadd.f32 %v932, %v749
    %v934 = vadd.f32 %v933, %v755
    %v935 = vadd.f32 %v934, %v759
    %v936 = vadd.f32 %v935, %v765
    %v937 = vadd.f32 %v936, %v769
    %v938 = vadd.f32 %v937, %v775
    %v939 = vadd.f32 %v938, %v779
    %v940 = vadd.f32 %v939, %v785
    %v941 = vadd.f32 %v940, %v789
    %v942 = vadd.f32 %v941, %v795
    %v943 = vadd.f32 %v942, %v799
    %v944 = vrot.slane %v943, 4
    %v945 = vadd.f32 %v943, %v944
    %v946 = vrot.slane %v945, 2
    %v947 = vadd.f32 %v945, %v946
    %v948 = vrot.slane %v947, 1
    %v949 = vadd.f32 %v947, %v948
    %v950 = vmul.f32 %v725, %v725
    %v951 = vmul.f32 %v729, %v729
    %v952 = vmul.f32 %v735, %v735
    %v953 = vmul.f32 %v739, %v739
    %v954 = vmul.f32 %v745, %v745
    %v955 = vmul.f32 %v749, %v749
    %v956 = vmul.f32 %v755, %v755
    %v957 = vmul.f32 %v759, %v759
    %v958 = vmul.f32 %v765, %v765
    %v959 = vmul.f32 %v769, %v769
    %v960 = vmul.f32 %v775, %v775
    %v961 = vmul.f32 %v779, %v779
    %v962 = vmul.f32 %v785, %v785
    %v963 = vmul.f32 %v789, %v789
    %v964 = vmul.f32 %v795, %v795
    %v965 = vmul.f32 %v799, %v799
    %v966 = vadd.f32 %v950, %v951
    %v967 = vadd.f32 %v966, %v952
    %v968 = vadd.f32 %v967, %v953
    %v969 = vadd.f32 %v968, %v954
    %v970 = vadd.f32 %v969, %v955
    %v971 = vadd.f32 %v970, %v956
    %v972 = vadd.f32 %v971, %v957
    %v973 = vadd.f32 %v972, %v958
    %v974 = vadd.f32 %v973, %v959
    %v975 = vadd.f32 %v974, %v960
    %v976 = vadd.f32 %v975, %v961
    %v977 = vadd.f32 %v976, %v962
    %v978 = vadd.f32 %v977, %v963
    %v979 = vadd.f32 %v978, %v964
    %v980 = vadd.f32 %v979, %v965
    %v981 = vrot.slane %v980, 4
    %v982 = vadd.f32 %v980, %v981
    %v983 = vrot.slane %v982, 2
    %v984 = vadd.f32 %v982, %v983
    %v985 = vrot.slane %v984, 1
    %v986 = vadd.f32 %v984, %v985
    %v987 = vmul.f32 %v949, 0.0078125
    %v988 = vmul.f32 %v986, 0.0078125
    %v989 = vmul.f32 %v987, %v987
    %v990 = vsub.f32 %v988, %v989
    %v991 = vmax.f32 %v990, 0.0
    %v992 = vadd.f32 %v991, 1e-05
    %v993 = vrsqrt.pop %v992
    %v994 = vmul.f32 %v803, %v993
    %v995 = vlaneseq
    %v996 = vshrl.u32 %v995, 7
    %v997 = vsub.s32 0, %v996
    %v998 = vrot.slane %v994, %v997
    %v999 = vmul.f32 %v725, %v998
    %v1000 = vmul.f32 %v729, %v998
    %v1001 = vmul.f32 %v735, %v998
    %v1002 = vmul.f32 %v739, %v998
    %v1003 = vmul.f32 %v745, %v998
    %v1004 = vmul.f32 %v749, %v998
    %v1005 = vmul.f32 %v755, %v998
    %v1006 = vmul.f32 %v759, %v998
    %v1007 = vmul.f32 %v765, %v998
    %v1008 = vmul.f32 %v769, %v998
    %v1009 = vmul.f32 %v775, %v998
    %v1010 = vmul.f32 %v779, %v998
    %v1011 = vmul.f32 %v785, %v998
    %v1012 = vmul.f32 %v789, %v998
    %v1013 = vmul.f32 %v795, %v998
    %v1014 = vmul.f32 %v799, %v998
    %v1015 = vmul.f32 %v987, %v994
    %v1016 = vsub.f32 %v804, %v1015
    %v1017 = vlaneseq
    %v1018 = vshrl.u32 %v1017, 7
    %v1019 = vsub.s32 0, %v1018
    %v1020 = vrot.slane %v1016, %v1019
    %v1021 = vadd.f32 %v999, %v1020
    %v1022 = vadd.f32 %v1000, %v1020
    %v1023 = vadd.f32 %v1001, %v1020
    %v1024 = vadd.f32 %v1002, %v1020
    %v1025 = vadd.f32 %v1003, %v1020
    %v1026 = vadd.f32 %v1004, %v1020
    %v1027 = vadd.f32 %v1005, %v1020
    %v1028 = vadd.f32 %v1006, %v1020
    %v1029 = vadd.f32 %v1007, %v1020
    %v1030 = vadd.f32 %v1008, %v1020
    %v1031 = vadd.f32 %v1009, %v1020
    %v1032 = vadd.f32 %v1010, %v1020
    %v1033 = vadd.f32 %v1011, %v1020
    %v1034 = vadd.f32 %v1012, %v1020
    %v1035 = vadd.f32 %v1013, %v1020
    %v1036 = vadd.f32 %v1014, %v1020
    %v1037 = vpack.c.bf16 %v914, %v913
    %v1038 = vpack.c.bf16 %v916, %v915
    %v1039 = vpack.c.bf16 %v918, %v917
    %v1040 = vpack.c.bf16 %v920, %v919
    %v1041 = vpack.c.bf16 %v922, %v921
    %v1042 = vpack.c.bf16 %v924, %v923
    %v1043 = vpack.c.bf16 %v926, %v925
    %v1044 = vpack.c.bf16 %v928, %v927
    %s1045 = scalar_lea.vmem [#allocation5], 384
    %v1046 = vld [vmem:[%s1045] sm:$0xf]
    %v1047 = vld [vmem:[%s1045 + $0x8] sm:$0xf]
    %v1048 = vld [vmem:[%s1045 + $0x10] sm:$0xf]
    %v1049 = vld [vmem:[%s1045 + $0x18] sm:$0xf]
    %v1050 = vld [vmem:[%s1045 + $0x20] sm:$0xf]
    %v1051 = vld [vmem:[%s1045 + $0x28] sm:$0xf]
    %v1052 = vld [vmem:[%s1045 + $0x30] sm:$0xf]
    %v1053 = vld [vmem:[%s1045 + $0x38] sm:$0xf]
    %v1054 = vld [vmem:[%s1045 + $0x40] sm:$0xf]
    %v1055 = vld [vmem:[%s1045 + $0x48] sm:$0xf]
    %v1056 = vld [vmem:[%s1045 + $0x50] sm:$0xf]
    %v1057 = vld [vmem:[%s1045 + $0x58] sm:$0xf]
    %v1058 = vld [vmem:[%s1045 + $0x60] sm:$0xf]
    %v1059 = vld [vmem:[%s1045 + $0x68] sm:$0xf]
    %v1060 = vld [vmem:[%s1045 + $0x70] sm:$0xf]
    %v1061 = vld [vmem:[%s1045 + $0x78] sm:$0xf]
    %v1078 = vunpack.c.l.b16 %v1046
    %v1079 = vunpack.c.l.b16 %v1047
    %v1080 = vunpack.c.l.b16 %v1048
    %v1081 = vunpack.c.l.b16 %v1049
    %v1082 = vunpack.c.l.b16 %v1050
    %v1083 = vunpack.c.l.b16 %v1051
    %v1084 = vunpack.c.l.b16 %v1052
    %v1085 = vunpack.c.l.b16 %v1053
    %v1086 = vunpack.c.l.b16 %v1054
    %v1087 = vunpack.c.l.b16 %v1055
    %v1088 = vunpack.c.l.b16 %v1056
    %v1089 = vunpack.c.l.b16 %v1057
    %v1090 = vunpack.c.l.b16 %v1058
    %v1091 = vunpack.c.l.b16 %v1059
    %v1092 = vunpack.c.l.b16 %v1060
    %v1093 = vunpack.c.l.b16 %v1061
    %v1094 = vpack.c.b16 %v1079, %v1078
    %v1095 = vpack.c.b16 %v1081, %v1080
    %v1096 = vpack.c.b16 %v1083, %v1082
    %v1097 = vpack.c.b16 %v1085, %v1084
    %v1098 = vpack.c.b16 %v1087, %v1086
    %v1099 = vpack.c.b16 %v1089, %v1088
    %v1100 = vpack.c.b16 %v1091, %v1090
    %v1101 = vpack.c.b16 %v1093, %v1092
    %1110 = vmatprep.subr.bf16.mxu0 0
    %1111 = vmatpush1.bf16.msra.mxu0 %v1094
    %1112 = vmatprep.subr.bf16.mxu0 0
    %1113 = vmatpush1.bf16.msra.mxu0 %v1095
    %1114 = vmatprep.subr.bf16.mxu0 0
    %1115 = vmatpush1.bf16.msra.mxu0 %v1096
    %1116 = vmatprep.subr.bf16.mxu0 0
    %1117 = vmatpush1.bf16.msra.mxu0 %v1097
    %1118 = vmatprep.subr.bf16.mxu0 0
    %1119 = vmatpush1.bf16.msra.mxu0 %v1098
    %1120 = vmatprep.subr.bf16.mxu0 0
    %1121 = vmatpush1.bf16.msra.mxu0 %v1099
    %1122 = vmatprep.subr.bf16.mxu0 0
    %1123 = vmatpush1.bf16.msra.mxu0 %v1100
    %1124 = vmatprep.subr.bf16.mxu0 0
    %1125 = vmatpush1.bf16.msra.mxu0 %v1101
    %1126 = vmatprep.subr.bf16.mxu0 0
    %1127 = vmatpush1.bf16.msra.mxu0 0
    %1128 = vmatprep.subr.bf16.mxu0 0
    %1129 = vmatpush1.bf16.msra.mxu0 0
    %1130 = vmatprep.subr.bf16.mxu0 0
    %1131 = vmatpush1.bf16.msra.mxu0 0
    %1132 = vmatprep.subr.bf16.mxu0 0
    %1133 = vmatpush1.bf16.msra.mxu0 0
    %1134 = vmatprep.subr.bf16.mxu0 0
    %1135 = vmatpush1.bf16.msra.mxu0 0
    %1136 = vmatprep.subr.bf16.mxu0 0
    %1137 = vmatpush1.bf16.msra.mxu0 0
    %1138 = vmatprep.subr.bf16.mxu0 0
    %1139 = vmatpush1.bf16.msra.mxu0 0
    %1140 = vmatprep.subr.bf16.mxu0 0
    %1141 = vmatpush1.bf16.msra.mxu0 0
    %1142 = vmatprep.mubr.bf16.mxu0 0
    %1143 = vmatmul.mubr.bf16.gmra.mrb[0].mxu0 %v1037
    %v1144 = vpop.f32.mrb[0].mxu0
    %v1145 = vadd.f32 0.0, %v1144
    %v1146 = vpop.f32.mrb[0].mxu0
    %v1147 = vpop.f32.mrb[0].mxu0
    %v1148 = vadd.f32 0.0, %v1147
    %v1149 = vpop.f32.mrb[0].mxu0
    %1150 = vmatprep.mubr.bf16.mxu0 0
    %1151 = vmatmul.mubr.bf16.gmra.mrb[0].mxu0 %v1038
    %v1152 = vpop.f32.mrb[0].mxu0
    %v1153 = vadd.f32 0.0, %v1152
    %v1154 = vpop.f32.mrb[0].mxu0
    %v1155 = vpop.f32.mrb[0].mxu0
    %v1156 = vadd.f32 0.0, %v1155
    %v1157 = vpop.f32.mrb[0].mxu0
    %1158 = vmatprep.mubr.bf16.mxu0 0
    %1159 = vmatmul.mubr.bf16.gmra.mrb[0].mxu0 %v1039
    %v1160 = vpop.f32.mrb[0].mxu0
    %v1161 = vadd.f32 0.0, %v1160
    %v1162 = vpop.f32.mrb[0].mxu0
    %v1163 = vpop.f32.mrb[0].mxu0
    %v1164 = vadd.f32 0.0, %v1163
    %v1165 = vpop.f32.mrb[0].mxu0
    %1166 = vmatprep.mubr.bf16.mxu0 0
    %1167 = vmatmul.mubr.bf16.gmra.mrb[0].mxu0 %v1040
    %v1168 = vpop.f32.mrb[0].mxu0
    %v1169 = vadd.f32 0.0, %v1168
    %v1170 = vpop.f32.mrb[0].mxu0
    %v1171 = vpop.f32.mrb[0].mxu0
    %v1172 = vadd.f32 0.0, %v1171
    %v1173 = vpop.f32.mrb[0].mxu0
    %1174 = vmatprep.mubr.bf16.mxu0 0
    %1175 = vmatmul.mubr.bf16.gmra.mrb[0].mxu0 %v1041
    %v1176 = vpop.f32.mrb[0].mxu0
    %v1177 = vadd.f32 0.0, %v1176
    %v1178 = vpop.f32.mrb[0].mxu0
    %v1179 = vpop.f32.mrb[0].mxu0
    %v1180 = vadd.f32 0.0, %v1179
    %v1181 = vpop.f32.mrb[0].mxu0
    %1182 = vmatprep.mubr.bf16.mxu0 0
    %1183 = vmatmul.mubr.bf16.gmra.mrb[0].mxu0 %v1042
    %v1184 = vpop.f32.mrb[0].mxu0
    %v1185 = vadd.f32 0.0, %v1184
    %v1186 = vpop.f32.mrb[0].mxu0
    %v1187 = vpop.f32.mrb[0].mxu0
    %v1188 = vadd.f32 0.0, %v1187
    %v1189 = vpop.f32.mrb[0].mxu0
    %1190 = vmatprep.mubr.bf16.mxu0 0
    %1191 = vmatmul.mubr.bf16.gmra.mrb[0].mxu0 %v1043
    %v1192 = vpop.f32.mrb[0].mxu0
    %v1193 = vadd.f32 0.0, %v1192
    %v1194 = vpop.f32.mrb[0].mxu0
    %v1195 = vpop.f32.mrb[0].mxu0
    %v1196 = vadd.f32 0.0, %v1195
    %v1197 = vpop.f32.mrb[0].mxu0
    %1198 = vmatprep.mubr.bf16.mxu0 0
    %1199 = vmatmul.mubr.bf16.gmra.mrb[0].mxu0 %v1044
    %v1200 = vpop.f32.mrb[0].mxu0
    %v1201 = vadd.f32 0.0, %v1200
    %v1202 = vpop.f32.mrb[0].mxu0
    %v1203 = vpop.f32.mrb[0].mxu0
    %v1204 = vadd.f32 0.0, %v1203
    %v1205 = vpop.f32.mrb[0].mxu0
    %1206 = vdwg.mxu0
    %v1207 = vld [vmem:[#allocation7 + $0x7] sm:$0x1]
    %v1208 = vld [vmem:[#allocation7 + $0x8] sm:$0x1]
    %v1209 = vadd.f32 %v1145, %v1148
    %v1210 = vadd.f32 %v1209, %v1153
    %v1211 = vadd.f32 %v1210, %v1156
    %v1212 = vadd.f32 %v1211, %v1161
    %v1213 = vadd.f32 %v1212, %v1164
    %v1214 = vadd.f32 %v1213, %v1169
    %v1215 = vadd.f32 %v1214, %v1172
    %v1216 = vadd.f32 %v1215, %v1177
    %v1217 = vadd.f32 %v1216, %v1180
    %v1218 = vadd.f32 %v1217, %v1185
    %v1219 = vadd.f32 %v1218, %v1188
    %v1220 = vadd.f32 %v1219, %v1193
    %v1221 = vadd.f32 %v1220, %v1196
    %v1222 = vadd.f32 %v1221, %v1201
    %v1223 = vadd.f32 %v1222, %v1204
    %v1224 = vrot.slane %v1223, 4
    %v1225 = vadd.f32 %v1223, %v1224
    %v1226 = vrot.slane %v1225, 2
    %v1227 = vadd.f32 %v1225, %v1226
    %v1228 = vrot.slane %v1227, 1
    %v1229 = vadd.f32 %v1227, %v1228
    %v1230 = vmul.f32 %v1145, %v1145
    %v1231 = vmul.f32 %v1148, %v1148
    %v1232 = vmul.f32 %v1153, %v1153
    %v1233 = vmul.f32 %v1156, %v1156
    %v1234 = vmul.f32 %v1161, %v1161
    %v1235 = vmul.f32 %v1164, %v1164
    %v1236 = vmul.f32 %v1169, %v1169
    %v1237 = vmul.f32 %v1172, %v1172
    %v1238 = vmul.f32 %v1177, %v1177
    %v1239 = vmul.f32 %v1180, %v1180
    %v1240 = vmul.f32 %v1185, %v1185
    %v1241 = vmul.f32 %v1188, %v1188
    %v1242 = vmul.f32 %v1193, %v1193
    %v1243 = vmul.f32 %v1196, %v1196
    %v1244 = vmul.f32 %v1201, %v1201
    %v1245 = vmul.f32 %v1204, %v1204
    %v1246 = vadd.f32 %v1230, %v1231
    %v1247 = vadd.f32 %v1246, %v1232
    %v1248 = vadd.f32 %v1247, %v1233
    %v1249 = vadd.f32 %v1248, %v1234
    %v1250 = vadd.f32 %v1249, %v1235
    %v1251 = vadd.f32 %v1250, %v1236
    %v1252 = vadd.f32 %v1251, %v1237
    %v1253 = vadd.f32 %v1252, %v1238
    %v1254 = vadd.f32 %v1253, %v1239
    %v1255 = vadd.f32 %v1254, %v1240
    %v1256 = vadd.f32 %v1255, %v1241
    %v1257 = vadd.f32 %v1256, %v1242
    %v1258 = vadd.f32 %v1257, %v1243
    %v1259 = vadd.f32 %v1258, %v1244
    %v1260 = vadd.f32 %v1259, %v1245
    %v1261 = vrot.slane %v1260, 4
    %v1262 = vadd.f32 %v1260, %v1261
    %v1263 = vrot.slane %v1262, 2
    %v1264 = vadd.f32 %v1262, %v1263
    %v1265 = vrot.slane %v1264, 1
    %v1266 = vadd.f32 %v1264, %v1265
    %v1267 = vmul.f32 %v1229, 0.0078125
    %v1268 = vmul.f32 %v1266, 0.0078125
    %v1269 = vmul.f32 %v1267, %v1267
    %v1270 = vsub.f32 %v1268, %v1269
    %v1271 = vmax.f32 %v1270, 0.0
    %v1272 = vadd.f32 %v1271, 1e-05
    %v1273 = vrsqrt.pop %v1272
    %v1274 = vmul.f32 %v1207, %v1273
    %v1275 = vlaneseq
    %v1276 = vshrl.u32 %v1275, 7
    %v1277 = vsub.s32 0, %v1276
    %v1278 = vrot.slane %v1274, %v1277
    %v1279 = vmul.f32 %v1145, %v1278
    %v1280 = vmul.f32 %v1148, %v1278
    %v1281 = vmul.f32 %v1153, %v1278
    %v1282 = vmul.f32 %v1156, %v1278
    %v1283 = vmul.f32 %v1161, %v1278
    %v1284 = vmul.f32 %v1164, %v1278
    %v1285 = vmul.f32 %v1169, %v1278
    %v1286 = vmul.f32 %v1172, %v1278
    %v1287 = vmul.f32 %v1177, %v1278
    %v1288 = vmul.f32 %v1180, %v1278
    %v1289 = vmul.f32 %v1185, %v1278
    %v1290 = vmul.f32 %v1188, %v1278
    %v1291 = vmul.f32 %v1193, %v1278
    %v1292 = vmul.f32 %v1196, %v1278
    %v1293 = vmul.f32 %v1201, %v1278
    %v1294 = vmul.f32 %v1204, %v1278
    %v1295 = vmul.f32 %v1267, %v1274
    %v1296 = vsub.f32 %v1208, %v1295
    %v1297 = vlaneseq
    %v1298 = vshrl.u32 %v1297, 7
    %v1299 = vsub.s32 0, %v1298
    %v1300 = vrot.slane %v1296, %v1299
    %v1301 = vadd.f32 %v1279, %v1300
    %v1302 = vadd.f32 %v1280, %v1300
    %v1303 = vadd.f32 %v1281, %v1300
    %v1304 = vadd.f32 %v1282, %v1300
    %v1305 = vadd.f32 %v1283, %v1300
    %v1306 = vadd.f32 %v1284, %v1300
    %v1307 = vadd.f32 %v1285, %v1300
    %v1308 = vadd.f32 %v1286, %v1300
    %v1309 = vadd.f32 %v1287, %v1300
    %v1310 = vadd.f32 %v1288, %v1300
    %v1311 = vadd.f32 %v1289, %v1300
    %v1312 = vadd.f32 %v1290, %v1300
    %v1313 = vadd.f32 %v1291, %v1300
    %v1314 = vadd.f32 %v1292, %v1300
    %v1315 = vadd.f32 %v1293, %v1300
    %v1316 = vadd.f32 %v1294, %v1300
    %v1317 = vadd.f32 %v1301, %v1021
    %v1318 = vadd.f32 %v1302, %v1022
    %v1319 = vadd.f32 %v1303, %v1023
    %v1320 = vadd.f32 %v1304, %v1024
    %v1321 = vadd.f32 %v1305, %v1025
    %v1322 = vadd.f32 %v1306, %v1026
    %v1323 = vadd.f32 %v1307, %v1027
    %v1324 = vadd.f32 %v1308, %v1028
    %v1325 = vadd.f32 %v1309, %v1029
    %v1326 = vadd.f32 %v1310, %v1030
    %v1327 = vadd.f32 %v1311, %v1031
    %v1328 = vadd.f32 %v1312, %v1032
    %v1329 = vadd.f32 %v1313, %v1033
    %v1330 = vadd.f32 %v1314, %v1034
    %v1331 = vadd.f32 %v1315, %v1035
    %v1332 = vadd.f32 %v1316, %v1036
    %v1333 = vmax.f32 %v1317, 0.0
    %v1334 = vmax.f32 %v1318, 0.0
    %v1335 = vmax.f32 %v1319, 0.0
    %v1336 = vmax.f32 %v1320, 0.0
    %v1337 = vmax.f32 %v1321, 0.0
    %v1338 = vmax.f32 %v1322, 0.0
    %v1339 = vmax.f32 %v1323, 0.0
    %v1340 = vmax.f32 %v1324, 0.0
    %v1341 = vmax.f32 %v1325, 0.0
    %v1342 = vmax.f32 %v1326, 0.0
    %v1343 = vmax.f32 %v1327, 0.0
    %v1344 = vmax.f32 %v1328, 0.0
    %v1345 = vmax.f32 %v1329, 0.0
    %v1346 = vmax.f32 %v1330, 0.0
    %v1347 = vmax.f32 %v1331, 0.0
    %v1348 = vmax.f32 %v1332, 0.0
    %v1349 = vpack.c.bf16 %v1334, %v1333
    %v1350 = vpack.c.bf16 %v1336, %v1335
    %v1351 = vpack.c.bf16 %v1338, %v1337
    %v1352 = vpack.c.bf16 %v1340, %v1339
    %v1353 = vpack.c.bf16 %v1342, %v1341
    %v1354 = vpack.c.bf16 %v1344, %v1343
    %v1355 = vpack.c.bf16 %v1346, %v1345
    %v1356 = vpack.c.bf16 %v1348, %v1347
    %s1357 = scalar_lea.vmem [#allocation5], 512
    %v1358 = vld [vmem:[%s1357] sm:$0xf]
    %v1359 = vld [vmem:[%s1357 + $0x8] sm:$0xf]
    %v1360 = vld [vmem:[%s1357 + $0x10] sm:$0xf]
    %v1361 = vld [vmem:[%s1357 + $0x18] sm:$0xf]
    %v1362 = vld [vmem:[%s1357 + $0x20] sm:$0xf]
    %v1363 = vld [vmem:[%s1357 + $0x28] sm:$0xf]
    %v1364 = vld [vmem:[%s1357 + $0x30] sm:$0xf]
    %v1365 = vld [vmem:[%s1357 + $0x38] sm:$0xf]
    %v1366 = vld [vmem:[%s1357 + $0x40] sm:$0xf]
    %v1367 = vld [vmem:[%s1357 + $0x48] sm:$0xf]
    %v1368 = vld [vmem:[%s1357 + $0x50] sm:$0xf]
    %v1369 = vld [vmem:[%s1357 + $0x58] sm:$0xf]
    %v1370 = vld [vmem:[%s1357 + $0x60] sm:$0xf]
    %v1371 = vld [vmem:[%s1357 + $0x68] sm:$0xf]
    %v1372 = vld [vmem:[%s1357 + $0x70] sm:$0xf]
    %v1373 = vld [vmem:[%s1357 + $0x78] sm:$0xf]
    %v1374 = vld [vmem:[#allocation7 + $0x9] sm:$0x1]
    %v1375 = vlaneseq
    %v1376 = vshrl.u32 %v1375, 7
    %v1377 = vsub.s32 0, %v1376
    %v1378 = vrot.slane %v1374, %v1377
    %v1395 = vunpack.c.l.b16 %v1358
    %v1396 = vunpack.c.l.b16 %v1359
    %v1397 = vunpack.c.l.b16 %v1360
    %v1398 = vunpack.c.l.b16 %v1361
    %v1399 = vunpack.c.l.b16 %v1362
    %v1400 = vunpack.c.l.b16 %v1363
    %v1401 = vunpack.c.l.b16 %v1364
    %v1402 = vunpack.c.l.b16 %v1365
    %v1403 = vunpack.c.l.b16 %v1366
    %v1404 = vunpack.c.l.b16 %v1367
    %v1405 = vunpack.c.l.b16 %v1368
    %v1406 = vunpack.c.l.b16 %v1369
    %v1407 = vunpack.c.l.b16 %v1370
    %v1408 = vunpack.c.l.b16 %v1371
    %v1409 = vunpack.c.l.b16 %v1372
    %v1410 = vunpack.c.l.b16 %v1373
    %v1411 = vpack.c.b16 %v1396, %v1395
    %v1412 = vpack.c.b16 %v1398, %v1397
    %v1413 = vpack.c.b16 %v1400, %v1399
    %v1414 = vpack.c.b16 %v1402, %v1401
    %v1415 = vpack.c.b16 %v1404, %v1403
    %v1416 = vpack.c.b16 %v1406, %v1405
    %v1417 = vpack.c.b16 %v1408, %v1407
    %v1418 = vpack.c.b16 %v1410, %v1409
    %1427 = vmatprep.subr.bf16.mxu0 0
    %1428 = vmatpush1.bf16.msra.mxu0 %v1411
    %1429 = vmatprep.subr.bf16.mxu0 0
    %1430 = vmatpush1.bf16.msra.mxu0 %v1412
    %1431 = vmatprep.subr.bf16.mxu0 0
    %1432 = vmatpush1.bf16.msra.mxu0 %v1413
    %1433 = vmatprep.subr.bf16.mxu0 0
    %1434 = vmatpush1.bf16.msra.mxu0 %v1414
    %1435 = vmatprep.subr.bf16.mxu0 0
    %1436 = vmatpush1.bf16.msra.mxu0 %v1415
    %1437 = vmatprep.subr.bf16.mxu0 0
    %1438 = vmatpush1.bf16.msra.mxu0 %v1416
    %1439 = vmatprep.subr.bf16.mxu0 0
    %1440 = vmatpush1.bf16.msra.mxu0 %v1417
    %1441 = vmatprep.subr.bf16.mxu0 0
    %1442 = vmatpush1.bf16.msra.mxu0 %v1418
    %1443 = vmatprep.subr.bf16.mxu0 0
    %1444 = vmatpush1.bf16.msra.mxu0 0
    %1445 = vmatprep.subr.bf16.mxu0 0
    %1446 = vmatpush1.bf16.msra.mxu0 0
    %1447 = vmatprep.subr.bf16.mxu0 0
    %1448 = vmatpush1.bf16.msra.mxu0 0
    %1449 = vmatprep.subr.bf16.mxu0 0
    %1450 = vmatpush1.bf16.msra.mxu0 0
    %1451 = vmatprep.subr.bf16.mxu0 0
    %1452 = vmatpush1.bf16.msra.mxu0 0
    %1453 = vmatprep.subr.bf16.mxu0 0
    %1454 = vmatpush1.bf16.msra.mxu0 0
    %1455 = vmatprep.subr.bf16.mxu0 0
    %1456 = vmatpush1.bf16.msra.mxu0 0
    %1457 = vmatprep.subr.bf16.mxu0 0
    %1458 = vmatpush1.bf16.msra.mxu0 0
    %1459 = vmatprep.mubr.bf16.mxu0 0
    %1460 = vmatmul.mubr.bf16.gmra.mrb[0].mxu0 %v1349
    %v1461 = vpop.f32.mrb[0].mxu0
    %v1462 = vadd.f32 %v1378, %v1461
    %v1463 = vpop.f32.mrb[0].mxu0
    %v1464 = vpop.f32.mrb[0].mxu0
    %v1465 = vadd.f32 %v1378, %v1464
    %v1466 = vpop.f32.mrb[0].mxu0
    %1467 = vmatprep.mubr.bf16.mxu0 0
    %1468 = vmatmul.mubr.bf16.gmra.mrb[0].mxu0 %v1350
    %v1469 = vpop.f32.mrb[0].mxu0
    %v1470 = vadd.f32 %v1378, %v1469
    %v1471 = vpop.f32.mrb[0].mxu0
    %v1472 = vpop.f32.mrb[0].mxu0
    %v1473 = vadd.f32 %v1378, %v1472
    %v1474 = vpop.f32.mrb[0].mxu0
    %1475 = vmatprep.mubr.bf16.mxu0 0
    %1476 = vmatmul.mubr.bf16.gmra.mrb[0].mxu0 %v1351
    %v1477 = vpop.f32.mrb[0].mxu0
    %v1478 = vadd.f32 %v1378, %v1477
    %v1479 = vpop.f32.mrb[0].mxu0
    %v1480 = vpop.f32.mrb[0].mxu0
    %v1481 = vadd.f32 %v1378, %v1480
    %v1482 = vpop.f32.mrb[0].mxu0
    %1483 = vmatprep.mubr.bf16.mxu0 0
    %1484 = vmatmul.mubr.bf16.gmra.mrb[0].mxu0 %v1352
    %v1485 = vpop.f32.mrb[0].mxu0
    %v1486 = vadd.f32 %v1378, %v1485
    %v1487 = vpop.f32.mrb[0].mxu0
    %v1488 = vpop.f32.mrb[0].mxu0
    %v1489 = vadd.f32 %v1378, %v1488
    %v1490 = vpop.f32.mrb[0].mxu0
    %1491 = vmatprep.mubr.bf16.mxu0 0
    %1492 = vmatmul.mubr.bf16.gmra.mrb[0].mxu0 %v1353
    %v1493 = vpop.f32.mrb[0].mxu0
    %v1494 = vadd.f32 %v1378, %v1493
    %v1495 = vpop.f32.mrb[0].mxu0
    %v1496 = vpop.f32.mrb[0].mxu0
    %v1497 = vadd.f32 %v1378, %v1496
    %v1498 = vpop.f32.mrb[0].mxu0
    %1499 = vmatprep.mubr.bf16.mxu0 0
    %1500 = vmatmul.mubr.bf16.gmra.mrb[0].mxu0 %v1354
    %v1501 = vpop.f32.mrb[0].mxu0
    %v1502 = vadd.f32 %v1378, %v1501
    %v1503 = vpop.f32.mrb[0].mxu0
    %v1504 = vpop.f32.mrb[0].mxu0
    %v1505 = vadd.f32 %v1378, %v1504
    %v1506 = vpop.f32.mrb[0].mxu0
    %1507 = vmatprep.mubr.bf16.mxu0 0
    %1508 = vmatmul.mubr.bf16.gmra.mrb[0].mxu0 %v1355
    %v1509 = vpop.f32.mrb[0].mxu0
    %v1510 = vadd.f32 %v1378, %v1509
    %v1511 = vpop.f32.mrb[0].mxu0
    %v1512 = vpop.f32.mrb[0].mxu0
    %v1513 = vadd.f32 %v1378, %v1512
    %v1514 = vpop.f32.mrb[0].mxu0
    %1515 = vmatprep.mubr.bf16.mxu0 0
    %1516 = vmatmul.mubr.bf16.gmra.mrb[0].mxu0 %v1356
    %v1517 = vpop.f32.mrb[0].mxu0
    %v1518 = vadd.f32 %v1378, %v1517
    %v1519 = vpop.f32.mrb[0].mxu0
    %v1520 = vpop.f32.mrb[0].mxu0
    %v1521 = vadd.f32 %v1378, %v1520
    %v1522 = vpop.f32.mrb[0].mxu0
    %1523 = vdwg.mxu0
    %1524 = vst [vmem:[#allocation8] sm:$0xff] %v1462
    %1525 = vst [vmem:[#allocation8 + $0x8] sm:$0xff] %v1465
    %1526 = vst [vmem:[#allocation8 + $0x10] sm:$0xff] %v1470
    %1527 = vst [vmem:[#allocation8 + $0x18] sm:$0xff] %v1473
    %1528 = vst [vmem:[#allocation8 + $0x20] sm:$0xff] %v1478
    %1529 = vst [vmem:[#allocation8 + $0x28] sm:$0xff] %v1481
    %1530 = vst [vmem:[#allocation8 + $0x30] sm:$0xff] %v1486
    %1531 = vst [vmem:[#allocation8 + $0x38] sm:$0xff] %v1489
    %1532 = vst [vmem:[#allocation8 + $0x40] sm:$0xff] %v1494
    %1533 = vst [vmem:[#allocation8 + $0x48] sm:$0xff] %v1497
    %1534 = vst [vmem:[#allocation8 + $0x50] sm:$0xff] %v1502
    %1535 = vst [vmem:[#allocation8 + $0x58] sm:$0xff] %v1505
    %1536 = vst [vmem:[#allocation8 + $0x60] sm:$0xff] %v1510
    %1537 = vst [vmem:[#allocation8 + $0x68] sm:$0xff] %v1513
    %1538 = vst [vmem:[#allocation8 + $0x70] sm:$0xff] %v1518
    %1539 = vst [vmem:[#allocation8 + $0x78] sm:$0xff] %v1521
    // Predicated region
    $region26: #{tpu_custom_call.1} parent=1 // pred_check
      _
    $region27: #{tpu_custom_call.1} parent=1 // pred_check_branch
      %1541 = sbr.rel (0) target = $region29
    $region28: #{tpu_custom_call.1} parent=1 // pred_region
      %s1543 = ssub.s32 2048, 2048
      %1544 = vsyncadd [#allocation4], %s1543
      %s1545 = sshll.u32 [#allocation8], 4
      %s1546 = int_to_ptr.vmem [resolvable:$true] %s1545
      %1551 = dma.vmem_to_hbm [thread:$0]  %s1546, 2048, %s3, [#allocation4], 128, 128, 8
    $region29: #{tpu_custom_call.1} parent=1 // pred_fallthru
      _
    // Predicated region
    $region30: #{tpu_custom_call.1} parent=1 // pred_check
      _
    $region31: #{tpu_custom_call.1} parent=1 // pred_check_branch
      %1553 = sbr.rel (0) target = $region33
    $region32: #{tpu_custom_call.1} parent=1 // pred_region
      %1554 = dma.done [#allocation4], 2048
    $region33: #{tpu_custom_call.1} parent=1 // pred_fallthru
      _
    %1555 = vsyncpa [#allocation3], 1
    %1556 = vsyncpa [#allocation6], 1
    %1557 = vsyncpa [#allocation4], 1

</llo_original>
